<compile_context>
chip_gen: v6e
topology: v6e:2x2x1
jax: 0.10.0
libtpu: 0.0.40
codegen_flags: <defaults>
</compile_context>

<pallas_src>
import functools
import math

import jax
import jax.numpy as jnp
from jax.experimental import pallas as pl
from jax.experimental.pallas import tpu as pltpu

_TOKEN_TILE = 512                 # rows of flattened (B*S) per grid step
_Q_TILE_MAX = 256                 # query rows per attention grid step
_VMEM_LIMIT = 64 * 1024 * 1024    # re-derive for v7x (64 MiB physical VMEM/TC)


def _round_up(x, m):
    return ((x + m - 1) // m) * m


def _pad_rows(x, n_rows):
    if x.shape[0] == n_rows:
        return x
    return jnp.pad(x, ((0, n_rows - x.shape[0]), (0, 0)))


def _choose_q_tile(seq_len):
    cand = _Q_TILE_MAX
    while cand >= 8:
        if seq_len % cand == 0:
            return cand
        cand //= 2
    return seq_len


# ---------------------------------------------------------------------------
# in-kernel helpers (all f32 math)
# ---------------------------------------------------------------------------
def _layernorm(x, gamma, beta, eps=1e-5):
    mu = jnp.mean(x, axis=-1, keepdims=True)
    xc = x - mu
    var = jnp.mean(xc * xc, axis=-1, keepdims=True)
    return xc * jax.lax.rsqrt(var + eps) * gamma + beta


def _gelu_exact(x):
    # PyTorch F.gelu(approximate='none'): 0.5*x*(1+erf(x/sqrt(2)))
    return 0.5 * x * (1.0 + jax.lax.erf(x * (1.0 / math.sqrt(2.0))))


# ---------------------------------------------------------------------------
# kernels
# ---------------------------------------------------------------------------
def embed_qkv_kernel(tok_ref, pos_ref, embvec_ref, wqkv_ref, bqkv_ref,
                     x_out_ref, qkv_out_ref):
    # embedded = LayerNorm(token_emb + positional_emb)  (normalize_before=False)
    # fused with the first layer's QKV projection (1/sqrt(Dh) folded into W_q).
    ev = embvec_ref[...]                                   # (2, D) f32
    x = _layernorm(tok_ref[...] + pos_ref[...], ev[0:1, :], ev[1:2, :])
    x_out_ref[...] = x
    qkv = jnp.dot(x.astype(jnp.bfloat16), wqkv_ref[...],
                  preferred_element_type=jnp.float32) + bqkv_ref[...]
    qkv_out_ref[...] = qkv.astype(qkv_out_ref.dtype)


def attention_kernel(qkv_ref, bias_ref, o_ref, *, num_heads, d_model, q_tile):
    # One (batch, query-tile) step.  qkv_ref is the whole per-batch [S, 3D]
    # bf16 slab (resident across the q axis); bias/scores/softmax stay f32.
    assert bias_ref.dtype == jnp.float32      # -1e30 mask must not be downcast
    d_head = d_model // num_heads
    bias = bias_ref[0]                                        # (1, S) f32
    q_start = pl.multiple_of(pl.program_id(1) * q_tile, q_tile)
    for h in range(num_heads):                                # static unroll
        qh = qkv_ref[pl.ds(q_start, q_tile), pl.ds(h * d_head, d_head)]
        kh = qkv_ref[:, pl.ds(d_model + h * d_head, d_head)]
        vh = qkv_ref[:, pl.ds(2 * d_model + h * d_head, d_head)]
        s = jax.lax.dot_general(qh, kh, (((1,), (1,)), ((), ())),
                                preferred_element_type=jnp.float32)  # (tq, S)
        s = s + bias
        m = jnp.max(s, axis=-1, keepdims=True)
        e = jnp.exp(s - m)
        denom = jnp.sum(e, axis=-1, keepdims=True)
        p = (e * pl.reciprocal(denom, approx=True)).astype(jnp.bfloat16)
        ctx = jnp.dot(p, vh, preferred_element_type=jnp.float32)     # (tq, Dh)
        # lane-dense [tq, D] output block, written head-slice by head-slice
        o_ref[:, pl.ds(h * d_head, d_head)] = ctx.astype(o_ref.dtype)


def _outproj_ffn(ctx_ref, x_ref, wo_ref, w1_ref, b1_ref, w2_ref, vecd_ref):
    # out-proj + residual + post-LN1, then FFN(GELU) + residual + post-LN2.
    vec = vecd_ref[...]                                       # (6, D) f32
    bo, g1, be1 = vec[0:1, :], vec[1:2, :], vec[2:3, :]
    b2, g2, be2 = vec[3:4, :], vec[4:5, :], vec[5:6, :]
    proj = jnp.dot(ctx_ref[...], wo_ref[...],
                   preferred_element_type=jnp.float32) + bo
    x1 = _layernorm(x_ref[...] + proj, g1, be1)
    h = jnp.dot(x1.astype(jnp.bfloat16), w1_ref[...],
                preferred_element_type=jnp.float32) + b1_ref[...]
    h = _gelu_exact(h)
    y = jnp.dot(h.astype(jnp.bfloat16), w2_ref[...],
                preferred_element_type=jnp.float32) + b2
    return _layernorm(x1 + y, g2, be2)


def layer_last_kernel(ctx_ref, x_ref, wo_ref, w1_ref, b1_ref, w2_ref, vecd_ref,
                      x_out_ref):
    x_out_ref[...] = _outproj_ffn(ctx_ref, x_ref, wo_ref, w1_ref, b1_ref,
                                  w2_ref, vecd_ref)


def layer_qkv_kernel(ctx_ref, x_ref, wo_ref, w1_ref, b1_ref, w2_ref, vecd_ref,
                     wqkv_ref, bqkv_ref, x_out_ref, qkv_out_ref):
    # same as layer_last_kernel, plus the *next* layer's QKV projection fused
    # in so x never takes an extra HBM round trip between layers.
    x2 = _outproj_ffn(ctx_ref, x_ref, wo_ref, w1_ref, b1_ref, w2_ref, vecd_ref)
    x_out_ref[...] = x2
    qkv = jnp.dot(x2.astype(jnp.bfloat16), wqkv_ref[...],
                  preferred_element_type=jnp.float32) + bqkv_ref[...]
    qkv_out_ref[...] = qkv.astype(qkv_out_ref.dtype)


# ---------------------------------------------------------------------------
# pallas_call wrappers
# ---------------------------------------------------------------------------
def _token_tiled_call(kernel, row_args, weight_args, out_dims, tm):
    """Grid over row tiles of the flattened token axis; weights VMEM-resident."""
    n = row_args[0].shape[0]
    grid = (n // tm,)

    def row_spec(a):
        return pl.BlockSpec((tm, a.shape[1]), lambda i: (i, 0))

    def full_spec(a):
        # Constant block index -> fetched once and revisited every step.
        # TODO(synk): pl.Buffered(1) here once single-buffered revisited blocks
        # are plumbed for top-level pallas_call (halves resident-weight VMEM).
        return pl.BlockSpec(a.shape, lambda i, _nd=a.ndim: (0,) * _nd)

    out_shape = tuple(jax.ShapeDtypeStruct((n, d), dt) for d, dt in out_dims)
    out_specs = tuple(pl.BlockSpec((tm, d), lambda i: (i, 0)) for d, _ in out_dims)
    return pl.pallas_call(
        kernel,
        out_shape=out_shape,
        grid=grid,
        in_specs=[row_spec(a) for a in row_args]
                 + [full_spec(a) for a in weight_args],
        out_specs=out_specs,
        compiler_params=pltpu.CompilerParams(
            dimension_semantics=("parallel",),
            vmem_limit_bytes=_VMEM_LIMIT),
    )(*row_args, *weight_args)


def _attention_call(qkv_flat, pad_bias, batch, seq_len, d_model, num_heads,
                    q_tile):
    n_pad = qkv_flat.shape[0]
    n_q = seq_len // q_tile
    kernel = functools.partial(attention_kernel, num_heads=num_heads,
                               d_model=d_model, q_tile=q_tile)
    return pl.pallas_call(
        kernel,
        out_shape=jax.ShapeDtypeStruct((n_pad, d_model), jnp.bfloat16),
        grid=(batch, n_q),
        in_specs=[
            # whole per-batch QKV slab; index_map constant over the q axis so
            # it is DMA'd once per batch element and stays VMEM-resident.
            pl.BlockSpec((seq_len, 3 * d_model), lambda b, q: (b, 0)),
            pl.BlockSpec((1, 1, seq_len), lambda b, q: (b, 0, 0)),
        ],
        out_specs=pl.BlockSpec((q_tile, d_model),
                               lambda b, q, _nq=n_q: (b * _nq + q, 0)),
        compiler_params=pltpu.CompilerParams(
            dimension_semantics=("parallel", "parallel"),
            vmem_limit_bytes=_VMEM_LIMIT),
    )(qkv_flat, pad_bias)


# ---------------------------------------------------------------------------
# parameters (pre-transposed, bf16 matmul weights, Q scale folded into W_qkv)
# ---------------------------------------------------------------------------
def init_params(key, vocab_size, embedding_dim, pad_idx, max_seq_len,
                num_layers, num_heads, ffn_dim):
    D = embedding_dim
    d_head = D // num_heads
    scale = 1.0 / math.sqrt(d_head)
    keys = jax.random.split(key, 2 + num_layers)

    tok_table = 0.02 * jax.random.normal(keys[0], (vocab_size, D), jnp.float32)
    tok_table = tok_table.at[pad_idx].set(0.0)   # nn.Embedding padding_idx row
    pos_table = 0.02 * jax.random.normal(keys[1], (max_seq_len, D), jnp.float32)
    pos_table = pos_table.at[pad_idx].set(0.0)

    # fold 1/sqrt(Dh) into the Q columns of the fused QKV projection
    qscale = jnp.concatenate(
        [jnp.full((D,), scale, jnp.float32), jnp.ones((2 * D,), jnp.float32)])

    layers = []
    for i in range(num_layers):
        lk = jax.random.split(keys[2 + i], 4)
        wqkv = 0.02 * jax.random.normal(lk[0], (D, 3 * D), jnp.float32)  # in_proj_weight.T
        bqkv = jnp.zeros((1, 3 * D), jnp.float32)
        # packed small vectors: [bo, ln1.g, ln1.b, linear2.b, ln2.g, ln2.b]
        vec_d = jnp.stack([
            jnp.zeros((D,), jnp.float32),   # out_proj bias
            jnp.ones((D,), jnp.float32),    # norm1 gamma
            jnp.zeros((D,), jnp.float32),   # norm1 beta
            jnp.zeros((D,), jnp.float32),   # linear2 bias
            jnp.ones((D,), jnp.float32),    # norm2 gamma
            jnp.zeros((D,), jnp.float32),   # norm2 beta
        ])
        layers.append(dict(
            wqkv=(wqkv * qscale[None, :]).astype(jnp.bfloat16),
            bqkv=bqkv * qscale[None, :],                                   # f32
            wo=(0.02 * jax.random.normal(lk[1], (D, D), jnp.float32)
                ).astype(jnp.bfloat16),                                    # out_proj.weight.T
            w1=(0.02 * jax.random.normal(lk[2], (D, ffn_dim), jnp.float32)
                ).astype(jnp.bfloat16),                                    # linear1.weight.T
            b1=jnp.zeros((1, ffn_dim), jnp.float32),
            w2=(0.02 * jax.random.normal(lk[3], (ffn_dim, D), jnp.float32)
                ).astype(jnp.bfloat16),                                    # linear2.weight.T
            vec_d=vec_d,
        ))
    emb_vec = jnp.stack([jnp.ones((D,), jnp.float32),
                         jnp.zeros((D,), jnp.float32)])      # embedding LN g/b
    return dict(tok_table=tok_table, pos_table=pos_table, emb_vec=emb_vec,
                layers=layers)


# ---------------------------------------------------------------------------
# forward
# ---------------------------------------------------------------------------
def transformer_encoder_forward(tokens, params, pad_idx, num_heads):
    B, S = tokens.shape
    D = params['tok_table'].shape[1]
    max_seq_len = params['pos_table'].shape[0]
    assert D % num_heads == 0
    # positions reach pad_idx + (#non-pad) <= pad_idx + S; must stay in-table.
    assert pad_idx + S < max_seq_len, "sequence too long for positional table"

    N = B * S
    tm = min(_TOKEN_TILE, _round_up(N, 8))
    n_pad = _round_up(N, tm)
    tq = _choose_q_tile(S)

    # ---- glue (plain JAX) ----
    # TODO(synk): embedding gathers + cumsum position ids have no clean Pallas
    # equivalent; final transpose handled once below.
    not_pad = (tokens != pad_idx).astype(jnp.int32)
    positions = jnp.cumsum(not_pad, axis=1) * not_pad + pad_idx
    tok_emb = _pad_rows(jnp.take(params['tok_table'], tokens.reshape(-1), axis=0), n_pad)
    pos_emb = _pad_rows(jnp.take(params['pos_table'], positions.reshape(-1), axis=0), n_pad)

    # key-padding mask -> additive f32 bias (must stay f32; -1e30 overflows bf16)
    pad_bias = jnp.where(tokens == pad_idx, -1e30, 0.0).astype(jnp.float32)
    pad_bias = pad_bias.reshape(B, 1, S)

    layers = params['layers']
    # fused: embedding add + LayerNorm + first layer's QKV (dropout = identity)
    x_flat, qkv_flat = _token_tiled_call(
        embed_qkv_kernel, [tok_emb, pos_emb],
        [params['emb_vec'], layers[0]['wqkv'], layers[0]['bqkv']],
        [(D, jnp.float32), (3 * D, jnp.bfloat16)], tm)

    for li, p in enumerate(layers):
        ctx_flat = _attention_call(qkv_flat, pad_bias, B, S, D, num_heads, tq)
        if li + 1 < len(layers):
            nxt = layers[li + 1]
            x_flat, qkv_flat = _token_tiled_call(
                layer_qkv_kernel, [ctx_flat, x_flat],
                [p['wo'], p['w1'], p['b1'], p['w2'], p['vec_d'],
                 nxt['wqkv'], nxt['bqkv']],
                [(D, jnp.float32), (3 * D, jnp.bfloat16)], tm)
        else:
            (x_flat,) = _token_tiled_call(
                layer_last_kernel, [ctx_flat, x_flat],
                [p['wo'], p['w1'], p['b1'], p['w2'], p['vec_d']],
                [(D, jnp.float32)], tm)

    out = x_flat[:N].reshape(B, S, D)
    # matches PyTorch `.transpose(1, 0)` on the batch-first output
    return jnp.transpose(out, (1, 0, 2))


if __name__ == "__main__":
    vocab_size, D, pad_idx = 100, 32, 1
    max_seq_len, num_layers, num_heads, ffn_dim = 64, 2, 4, 64
    B, S = 2, 8

    key = jax.random.PRNGKey(0)
    pk, dk = jax.random.split(key)
    params = init_params(pk, vocab_size, D, pad_idx, max_seq_len,
                         num_layers, num_heads, ffn_dim)

    tokens = jax.random.randint(dk, (B, S), 2, vocab_size, dtype=jnp.int32)
    tokens = tokens.at[1, -3:].set(pad_idx)   # some padded positions in row 1

    fwd = jax.jit(functools.partial(transformer_encoder_forward,
                                    pad_idx=pad_idx, num_heads=num_heads))
    out = fwd(tokens, params)
    out = jax.block_until_ready(out)
    assert out.shape == (S, B, D) and out.dtype == jnp.float32
    assert bool(jnp.all(jnp.isfinite(out)))
    print("KERNEL_OK")
</pallas_src>

<mosaic_0001>
module attributes {stable_mosaic.version = 11 : i64} {
  func.func @embed_qkv_kernel(%arg0: i32, %arg1: memref<16x32xf32, #tpu.memory_space<vmem>>, %arg2: memref<16x32xf32, #tpu.memory_space<vmem>>, %arg3: memref<2x32xf32, #tpu.memory_space<vmem>>, %arg4: memref<32x96xbf16, #tpu.memory_space<vmem>>, %arg5: memref<1x96xf32, #tpu.memory_space<vmem>>, %arg6: memref<16x32xf32, #tpu.memory_space<vmem>>, %arg7: memref<16x96xbf16, #tpu.memory_space<vmem>>) attributes {dimension_semantics = [#tpu.dimension_semantics<parallel>], iteration_bounds = array<i64: 1>, scalar_prefetch = 0 : i64, scratch_operands = 0 : i64, tpu.core_type = #tpu.core_type<tc>, window_params = [{transform_indices = @transform_0, window_bounds = array<i64: 16, 32>}, {transform_indices = @transform_1, window_bounds = array<i64: 16, 32>}, {pipeline_mode = #tpu.pipeline_mode<synchronous>, transform_indices = @transform_2, window_bounds = array<i64: 2, 32>}, {pipeline_mode = #tpu.pipeline_mode<synchronous>, transform_indices = @transform_3, window_bounds = array<i64: 32, 96>}, {pipeline_mode = #tpu.pipeline_mode<synchronous>, transform_indices = @transform_4, window_bounds = array<i64: 1, 96>}, {transform_indices = @transform_5, window_bounds = array<i64: 16, 32>}, {transform_indices = @transform_6, window_bounds = array<i64: 16, 96>}]} {
    %c0 = arith.constant 0 : index
    %c0_0 = arith.constant 0 : index
    %0 = vector.load %arg3[%c0, %c0_0] : memref<2x32xf32, #tpu.memory_space<vmem>>, vector<2x32xf32>
    %c0_1 = arith.constant 0 : index
    %c0_2 = arith.constant 0 : index
    %1 = vector.load %arg1[%c0_1, %c0_2] : memref<16x32xf32, #tpu.memory_space<vmem>>, vector<16x32xf32>
    %c0_3 = arith.constant 0 : index
    %c0_4 = arith.constant 0 : index
    %2 = vector.load %arg2[%c0_3, %c0_4] : memref<16x32xf32, #tpu.memory_space<vmem>>, vector<16x32xf32>
    %3 = arith.addf %1, %2 : vector<16x32xf32>
    %4 = vector.extract_strided_slice %0 {offsets = [0, 0], sizes = [1, 32], strides = [1, 1]} : vector<2x32xf32> to vector<1x32xf32>
    %5 = vector.extract_strided_slice %0 {offsets = [1, 0], sizes = [1, 32], strides = [1, 1]} : vector<2x32xf32> to vector<1x32xf32>
    %cst = arith.constant dense<0.000000e+00> : vector<16xf32>
    %6 = vector.multi_reduction <add>, %3, %cst [1] : vector<16x32xf32> to vector<16xf32>
    %7 = vector.shape_cast %6 : vector<16xf32> to vector<16x1xf32>
    %cst_5 = arith.constant 3.200000e+01 : f32
    %8 = vector.broadcast %cst_5 : f32 to vector<16x1xf32>
    %9 = arith.divf %7, %8 : vector<16x1xf32>
    %10 = vector.broadcast %9 : vector<16x1xf32> to vector<16x32xf32>
    %11 = arith.subf %3, %10 : vector<16x32xf32>
    %12 = arith.mulf %11, %11 : vector<16x32xf32>
    %cst_6 = arith.constant dense<0.000000e+00> : vector<16xf32>
    %13 = vector.multi_reduction <add>, %12, %cst_6 [1] : vector<16x32xf32> to vector<16xf32>
    %14 = vector.shape_cast %13 : vector<16xf32> to vector<16x1xf32>
    %cst_7 = arith.constant 3.200000e+01 : f32
    %15 = vector.broadcast %cst_7 : f32 to vector<16x1xf32>
    %16 = arith.divf %14, %15 : vector<16x1xf32>
    %cst_8 = arith.constant 9.99999974E-6 : f32
    %17 = vector.broadcast %cst_8 : f32 to vector<16x1xf32>
    %18 = arith.addf %16, %17 : vector<16x1xf32>
    %19 = math.rsqrt %18 : vector<16x1xf32>
    %20 = vector.broadcast %19 : vector<16x1xf32> to vector<16x32xf32>
    %21 = arith.mulf %11, %20 : vector<16x32xf32>
    %22 = vector.broadcast %4 : vector<1x32xf32> to vector<16x32xf32>
    %23 = arith.mulf %21, %22 : vector<16x32xf32>
    %24 = vector.broadcast %5 : vector<1x32xf32> to vector<16x32xf32>
    %25 = arith.addf %23, %24 : vector<16x32xf32>
    %c0_9 = arith.constant 0 : index
    %c0_10 = arith.constant 0 : index
    %26 = vector.load %arg6[%c0_9, %c0_10] : memref<16x32xf32, #tpu.memory_space<vmem>>, vector<16x32xf32>
    tpu.vector_store %arg6[%c0_9, %c0_10], %25 {strides = array<i32>} : memref<16x32xf32, #tpu.memory_space<vmem>>, vector<16x32xf32>,
    %27 = arith.truncf %25 : vector<16x32xf32> to vector<16x32xbf16>
    %c0_11 = arith.constant 0 : index
    %c0_12 = arith.constant 0 : index
    %28 = vector.load %arg4[%c0_11, %c0_12] : memref<32x96xbf16, #tpu.memory_space<vmem>>, vector<32x96xbf16>
    %cst_13 = arith.constant dense<0.000000e+00> : vector<16x96xf32>
    %29 = tpu.matmul %27, %28, %cst_13 {dimension_numbers = #tpu.dot_dimension_numbers<[1], [0], [0], [1], [0, 0, 1, 1], [], []>} : vector<16x32xbf16>, vector<32x96xbf16>, vector<16x96xf32> -> vector<16x96xf32>
    %c0_14 = arith.constant 0 : index
    %c0_15 = arith.constant 0 : index
    %30 = vector.load %arg5[%c0_14, %c0_15] : memref<1x96xf32, #tpu.memory_space<vmem>>, vector<1x96xf32>
    %31 = vector.broadcast %30 : vector<1x96xf32> to vector<16x96xf32>
    %32 = arith.addf %29, %31 : vector<16x96xf32>
    %33 = arith.truncf %32 : vector<16x96xf32> to vector<16x96xbf16>
    %c0_16 = arith.constant 0 : index
    %c0_17 = arith.constant 0 : index
    %34 = vector.load %arg7[%c0_16, %c0_17] : memref<16x96xbf16, #tpu.memory_space<vmem>>, vector<16x96xbf16>
    tpu.vector_store %arg7[%c0_16, %c0_17], %33 {strides = array<i32>} : memref<16x96xbf16, #tpu.memory_space<vmem>>, vector<16x96xbf16>,
    return
  }
  func.func @transform_0(%arg0: i32) -> (i32, i32) {
    %c0_i32 = arith.constant 0 : i32
    %c0_i32_0 = arith.constant 0 : i32
    return %arg0, %c0_i32 : i32, i32
  }
  func.func @transform_1(%arg0: i32) -> (i32, i32) {
    %c0_i32 = arith.constant 0 : i32
    %c0_i32_0 = arith.constant 0 : i32
    return %arg0, %c0_i32 : i32, i32
  }
  func.func @transform_2(%arg0: i32) -> (i32, i32) {
    %c0_i32 = arith.constant 0 : i32
    %c0_i32_0 = arith.constant 0 : i32
    %c0_i32_1 = arith.constant 0 : i32
    return %c0_i32, %c0_i32_0 : i32, i32
  }
  func.func @transform_3(%arg0: i32) -> (i32, i32) {
    %c0_i32 = arith.constant 0 : i32
    %c0_i32_0 = arith.constant 0 : i32
    %c0_i32_1 = arith.constant 0 : i32
    return %c0_i32, %c0_i32_0 : i32, i32
  }
  func.func @transform_4(%arg0: i32) -> (i32, i32) {
    %c0_i32 = arith.constant 0 : i32
    %c0_i32_0 = arith.constant 0 : i32
    %c0_i32_1 = arith.constant 0 : i32
    return %c0_i32, %c0_i32_0 : i32, i32
  }
  func.func @transform_5(%arg0: i32) -> (i32, i32) {
    %c0_i32 = arith.constant 0 : i32
    %c0_i32_0 = arith.constant 0 : i32
    return %arg0, %c0_i32 : i32, i32
  }
  func.func @transform_6(%arg0: i32) -> (i32, i32) {
    %c0_i32 = arith.constant 0 : i32
    %c0_i32_0 = arith.constant 0 : i32
    return %arg0, %c0_i32 : i32, i32
  }
}

module attributes {stable_mosaic.version = 11 : i64} {
  func.func @attention_kernel(%arg0: i32, %arg1: i32, %arg2: memref<8x96xbf16, #tpu.memory_space<vmem>>, %arg3: memref<1x1x8xf32, #tpu.memory_space<vmem>>, %arg4: memref<8x32xbf16, #tpu.memory_space<vmem>>) attributes {dimension_semantics = [#tpu.dimension_semantics<parallel>, #tpu.dimension_semantics<parallel>], iteration_bounds = array<i64: 2, 1>, scalar_prefetch = 0 : i64, scratch_operands = 0 : i64, tpu.core_type = #tpu.core_type<tc>, window_params = [{transform_indices = @transform_0, window_bounds = array<i64: 8, 96>}, {transform_indices = @transform_1, window_bounds = array<i64: 1, 1, 8>}, {transform_indices = @transform_2, window_bounds = array<i64: 8, 32>}]} {
    %c0 = arith.constant 0 : index
    %c0_0 = arith.constant 0 : index
    %c0_1 = arith.constant 0 : index
    %0 = vector.load %arg3[%c0, %c0_0, %c0_1] : memref<1x1x8xf32, #tpu.memory_space<vmem>>, vector<1x1x8xf32>
    %1 = vector.shape_cast %0 : vector<1x1x8xf32> to vector<1x8xf32>
    %c8_i32 = arith.constant 8 : i32
    %2 = arith.muli %arg1, %c8_i32 : i32
    %3 = tpu.assume_multiple %2, 8 : i32
    %4 = arith.index_cast %3 : i32 to index
    %c0_2 = arith.constant 0 : index
    %5 = vector.load %arg2[%4, %c0_2] : memref<8x96xbf16, #tpu.memory_space<vmem>>, vector<8x8xbf16>
    %c0_3 = arith.constant 0 : index
    %c32 = arith.constant 32 : index
    %6 = vector.load %arg2[%c0_3, %c32] : memref<8x96xbf16, #tpu.memory_space<vmem>>, vector<8x8xbf16>
    %c0_4 = arith.constant 0 : index
    %c64 = arith.constant 64 : index
    %7 = vector.load %arg2[%c0_4, %c64] : memref<8x96xbf16, #tpu.memory_space<vmem>>, vector<8x8xbf16>
    %cst = arith.constant dense<0.000000e+00> : vector<8x8xf32>
    %8 = tpu.matmul %5, %6, %cst {dimension_numbers = #tpu.dot_dimension_numbers<[1], [1], [0], [0], [0, 0, 1, 0], [], []>} : vector<8x8xbf16>, vector<8x8xbf16>, vector<8x8xf32> -> vector<8x8xf32>
    %9 = vector.broadcast %1 : vector<1x8xf32> to vector<8x8xf32>
    %10 = arith.addf %8, %9 : vector<8x8xf32>
    %cst_5 = arith.constant dense<0xFF800000> : vector<8xf32>
    %11 = vector.multi_reduction <maximumf>, %10, %cst_5 [1] : vector<8x8xf32> to vector<8xf32>
    %12 = vector.shape_cast %11 : vector<8xf32> to vector<8x1xf32>
    %13 = vector.broadcast %12 : vector<8x1xf32> to vector<8x8xf32>
    %14 = arith.subf %10, %13 : vector<8x8xf32>
    %15 = math.exp %14 : vector<8x8xf32>
    %cst_6 = arith.constant dense<0.000000e+00> : vector<8xf32>
    %16 = vector.multi_reduction <add>, %15, %cst_6 [1] : vector<8x8xf32> to vector<8xf32>
    %17 = vector.shape_cast %16 : vector<8xf32> to vector<8x1xf32>
    %18 = tpu.reciprocal %17 {approx = true} : vector<8x1xf32> -> vector<8x1xf32>
    %19 = vector.broadcast %18 : vector<8x1xf32> to vector<8x8xf32>
    %20 = arith.mulf %15, %19 : vector<8x8xf32>
    %21 = arith.truncf %20 : vector<8x8xf32> to vector<8x8xbf16>
    %cst_7 = arith.constant dense<0.000000e+00> : vector<8x8xf32>
    %22 = tpu.matmul %21, %7, %cst_7 {dimension_numbers = #tpu.dot_dimension_numbers<[1], [0], [0], [1], [0, 0, 1, 1], [], []>} : vector<8x8xbf16>, vector<8x8xbf16>, vector<8x8xf32> -> vector<8x8xf32>
    %23 = arith.truncf %22 : vector<8x8xf32> to vector<8x8xbf16>
    %c0_8 = arith.constant 0 : index
    %c0_9 = arith.constant 0 : index
    %24 = vector.load %arg4[%c0_8, %c0_9] : memref<8x32xbf16, #tpu.memory_space<vmem>>, vector<8x8xbf16>
    tpu.vector_store %arg4[%c0_8, %c0_9], %23 {strides = array<i32>} : memref<8x32xbf16, #tpu.memory_space<vmem>>, vector<8x8xbf16>,
    %25 = arith.index_cast %3 : i32 to index
    %c8 = arith.constant 8 : index
    %26 = vector.load %arg2[%25, %c8] : memref<8x96xbf16, #tpu.memory_space<vmem>>, vector<8x8xbf16>
    %c0_10 = arith.constant 0 : index
    %c40 = arith.constant 40 : index
    %27 = vector.load %arg2[%c0_10, %c40] : memref<8x96xbf16, #tpu.memory_space<vmem>>, vector<8x8xbf16>
    %c0_11 = arith.constant 0 : index
    %c72 = arith.constant 72 : index
    %28 = vector.load %arg2[%c0_11, %c72] : memref<8x96xbf16, #tpu.memory_space<vmem>>, vector<8x8xbf16>
    %cst_12 = arith.constant dense<0.000000e+00> : vector<8x8xf32>
    %29 = tpu.matmul %26, %27, %cst_12 {dimension_numbers = #tpu.dot_dimension_numbers<[1], [1], [0], [0], [0, 0, 1, 0], [], []>} : vector<8x8xbf16>, vector<8x8xbf16>, vector<8x8xf32> -> vector<8x8xf32>
    %30 = vector.broadcast %1 : vector<1x8xf32> to vector<8x8xf32>
    %31 = arith.addf %29, %30 : vector<8x8xf32>
    %cst_13 = arith.constant dense<0xFF800000> : vector<8xf32>
    %32 = vector.multi_reduction <maximumf>, %31, %cst_13 [1] : vector<8x8xf32> to vector<8xf32>
    %33 = vector.shape_cast %32 : vector<8xf32> to vector<8x1xf32>
    %34 = vector.broadcast %33 : vector<8x1xf32> to vector<8x8xf32>
    %35 = arith.subf %31, %34 : vector<8x8xf32>
    %36 = math.exp %35 : vector<8x8xf32>
    %cst_14 = arith.constant dense<0.000000e+00> : vector<8xf32>
    %37 = vector.multi_reduction <add>, %36, %cst_14 [1] : vector<8x8xf32> to vector<8xf32>
    %38 = vector.shape_cast %37 : vector<8xf32> to vector<8x1xf32>
    %39 = tpu.reciprocal %38 {approx = true} : vector<8x1xf32> -> vector<8x1xf32>
    %40 = vector.broadcast %39 : vector<8x1xf32> to vector<8x8xf32>
    %41 = arith.mulf %36, %40 : vector<8x8xf32>
    %42 = arith.truncf %41 : vector<8x8xf32> to vector<8x8xbf16>
    %cst_15 = arith.constant dense<0.000000e+00> : vector<8x8xf32>
    %43 = tpu.matmul %42, %28, %cst_15 {dimension_numbers = #tpu.dot_dimension_numbers<[1], [0], [0], [1], [0, 0, 1, 1], [], []>} : vector<8x8xbf16>, vector<8x8xbf16>, vector<8x8xf32> -> vector<8x8xf32>
    %44 = arith.truncf %43 : vector<8x8xf32> to vector<8x8xbf16>
    %c0_16 = arith.constant 0 : index
    %c8_17 = arith.constant 8 : index
    %45 = vector.load %arg4[%c0_16, %c8_17] : memref<8x32xbf16, #tpu.memory_space<vmem>>, vector<8x8xbf16>
    tpu.vector_store %arg4[%c0_16, %c8_17], %44 {strides = array<i32>} : memref<8x32xbf16, #tpu.memory_space<vmem>>, vector<8x8xbf16>,
    %46 = arith.index_cast %3 : i32 to index
    %c16 = arith.constant 16 : index
    %47 = vector.load %arg2[%46, %c16] : memref<8x96xbf16, #tpu.memory_space<vmem>>, vector<8x8xbf16>
    %c0_18 = arith.constant 0 : index
    %c48 = arith.constant 48 : index
    %48 = vector.load %arg2[%c0_18, %c48] : memref<8x96xbf16, #tpu.memory_space<vmem>>, vector<8x8xbf16>
    %c0_19 = arith.constant 0 : index
    %c80 = arith.constant 80 : index
    %49 = vector.load %arg2[%c0_19, %c80] : memref<8x96xbf16, #tpu.memory_space<vmem>>, vector<8x8xbf16>
    %cst_20 = arith.constant dense<0.000000e+00> : vector<8x8xf32>
    %50 = tpu.matmul %47, %48, %cst_20 {dimension_numbers = #tpu.dot_dimension_numbers<[1], [1], [0], [0], [0, 0, 1, 0], [], []>} : vector<8x8xbf16>, vector<8x8xbf16>, vector<8x8xf32> -> vector<8x8xf32>
    %51 = vector.broadcast %1 : vector<1x8xf32> to vector<8x8xf32>
    %52 = arith.addf %50, %51 : vector<8x8xf32>
    %cst_21 = arith.constant dense<0xFF800000> : vector<8xf32>
    %53 = vector.multi_reduction <maximumf>, %52, %cst_21 [1] : vector<8x8xf32> to vector<8xf32>
    %54 = vector.shape_cast %53 : vector<8xf32> to vector<8x1xf32>
    %55 = vector.broadcast %54 : vector<8x1xf32> to vector<8x8xf32>
    %56 = arith.subf %52, %55 : vector<8x8xf32>
    %57 = math.exp %56 : vector<8x8xf32>
    %cst_22 = arith.constant dense<0.000000e+00> : vector<8xf32>
    %58 = vector.multi_reduction <add>, %57, %cst_22 [1] : vector<8x8xf32> to vector<8xf32>
    %59 = vector.shape_cast %58 : vector<8xf32> to vector<8x1xf32>
    %60 = tpu.reciprocal %59 {approx = true} : vector<8x1xf32> -> vector<8x1xf32>
    %61 = vector.broadcast %60 : vector<8x1xf32> to vector<8x8xf32>
    %62 = arith.mulf %57, %61 : vector<8x8xf32>
    %63 = arith.truncf %62 : vector<8x8xf32> to vector<8x8xbf16>
    %cst_23 = arith.constant dense<0.000000e+00> : vector<8x8xf32>
    %64 = tpu.matmul %63, %49, %cst_23 {dimension_numbers = #tpu.dot_dimension_numbers<[1], [0], [0], [1], [0, 0, 1, 1], [], []>} : vector<8x8xbf16>, vector<8x8xbf16>, vector<8x8xf32> -> vector<8x8xf32>
    %65 = arith.truncf %64 : vector<8x8xf32> to vector<8x8xbf16>
    %c0_24 = arith.constant 0 : index
    %c16_25 = arith.constant 16 : index
    %66 = vector.load %arg4[%c0_24, %c16_25] : memref<8x32xbf16, #tpu.memory_space<vmem>>, vector<8x8xbf16>
    tpu.vector_store %arg4[%c0_24, %c16_25], %65 {strides = array<i32>} : memref<8x32xbf16, #tpu.memory_space<vmem>>, vector<8x8xbf16>,
    %67 = arith.index_cast %3 : i32 to index
    %c24 = arith.constant 24 : index
    %68 = vector.load %arg2[%67, %c24] : memref<8x96xbf16, #tpu.memory_space<vmem>>, vector<8x8xbf16>
    %c0_26 = arith.constant 0 : index
    %c56 = arith.constant 56 : index
    %69 = vector.load %arg2[%c0_26, %c56] : memref<8x96xbf16, #tpu.memory_space<vmem>>, vector<8x8xbf16>
    %c0_27 = arith.constant 0 : index
    %c88 = arith.constant 88 : index
    %70 = vector.load %arg2[%c0_27, %c88] : memref<8x96xbf16, #tpu.memory_space<vmem>>, vector<8x8xbf16>
    %cst_28 = arith.constant dense<0.000000e+00> : vector<8x8xf32>
    %71 = tpu.matmul %68, %69, %cst_28 {dimension_numbers = #tpu.dot_dimension_numbers<[1], [1], [0], [0], [0, 0, 1, 0], [], []>} : vector<8x8xbf16>, vector<8x8xbf16>, vector<8x8xf32> -> vector<8x8xf32>
    %72 = vector.broadcast %1 : vector<1x8xf32> to vector<8x8xf32>
    %73 = arith.addf %71, %72 : vector<8x8xf32>
    %cst_29 = arith.constant dense<0xFF800000> : vector<8xf32>
    %74 = vector.multi_reduction <maximumf>, %73, %cst_29 [1] : vector<8x8xf32> to vector<8xf32>
    %75 = vector.shape_cast %74 : vector<8xf32> to vector<8x1xf32>
    %76 = vector.broadcast %75 : vector<8x1xf32> to vector<8x8xf32>
    %77 = arith.subf %73, %76 : vector<8x8xf32>
    %78 = math.exp %77 : vector<8x8xf32>
    %cst_30 = arith.constant dense<0.000000e+00> : vector<8xf32>
    %79 = vector.multi_reduction <add>, %78, %cst_30 [1] : vector<8x8xf32> to vector<8xf32>
    %80 = vector.shape_cast %79 : vector<8xf32> to vector<8x1xf32>
    %81 = tpu.reciprocal %80 {approx = true} : vector<8x1xf32> -> vector<8x1xf32>
    %82 = vector.broadcast %81 : vector<8x1xf32> to vector<8x8xf32>
    %83 = arith.mulf %78, %82 : vector<8x8xf32>
    %84 = arith.truncf %83 : vector<8x8xf32> to vector<8x8xbf16>
    %cst_31 = arith.constant dense<0.000000e+00> : vector<8x8xf32>
    %85 = tpu.matmul %84, %70, %cst_31 {dimension_numbers = #tpu.dot_dimension_numbers<[1], [0], [0], [1], [0, 0, 1, 1], [], []>} : vector<8x8xbf16>, vector<8x8xbf16>, vector<8x8xf32> -> vector<8x8xf32>
    %86 = arith.truncf %85 : vector<8x8xf32> to vector<8x8xbf16>
    %c0_32 = arith.constant 0 : index
    %c24_33 = arith.constant 24 : index
    %87 = vector.load %arg4[%c0_32, %c24_33] : memref<8x32xbf16, #tpu.memory_space<vmem>>, vector<8x8xbf16>
    tpu.vector_store %arg4[%c0_32, %c24_33], %86 {strides = array<i32>} : memref<8x32xbf16, #tpu.memory_space<vmem>>, vector<8x8xbf16>,
    return
  }
  func.func @transform_0(%arg0: i32, %arg1: i32) -> (i32, i32) {
    %c0_i32 = arith.constant 0 : i32
    %c0_i32_0 = arith.constant 0 : i32
    return %arg0, %c0_i32 : i32, i32
  }
  func.func @transform_1(%arg0: i32, %arg1: i32) -> (i32, i32, i32) {
    %c0_i32 = arith.constant 0 : i32
    %c0_i32_0 = arith.constant 0 : i32
    %c0_i32_1 = arith.constant 0 : i32
    return %arg0, %c0_i32, %c0_i32_0 : i32, i32, i32
  }
  func.func @transform_2(%arg0: i32, %arg1: i32) -> (i32, i32) {
    %c1_i32 = arith.constant 1 : i32
    %0 = arith.muli %arg0, %c1_i32 : i32
    %1 = arith.addi %0, %arg1 : i32
    %c0_i32 = arith.constant 0 : i32
    %c0_i32_0 = arith.constant 0 : i32
    return %1, %c0_i32 : i32, i32
  }
}

module attributes {stable_mosaic.version = 11 : i64} {
  func.func @layer_qkv_kernel(%arg0: i32, %arg1: memref<16x32xbf16, #tpu.memory_space<vmem>>, %arg2: memref<16x32xf32, #tpu.memory_space<vmem>>, %arg3: memref<32x32xbf16, #tpu.memory_space<vmem>>, %arg4: memref<32x64xbf16, #tpu.memory_space<vmem>>, %arg5: memref<1x64xf32, #tpu.memory_space<vmem>>, %arg6: memref<64x32xbf16, #tpu.memory_space<vmem>>, %arg7: memref<6x32xf32, #tpu.memory_space<vmem>>, %arg8: memref<32x96xbf16, #tpu.memory_space<vmem>>, %arg9: memref<1x96xf32, #tpu.memory_space<vmem>>, %arg10: memref<16x32xf32, #tpu.memory_space<vmem>>, %arg11: memref<16x96xbf16, #tpu.memory_space<vmem>>) attributes {dimension_semantics = [#tpu.dimension_semantics<parallel>], iteration_bounds = array<i64: 1>, scalar_prefetch = 0 : i64, scratch_operands = 0 : i64, tpu.core_type = #tpu.core_type<tc>, window_params = [{transform_indices = @transform_0, window_bounds = array<i64: 16, 32>}, {transform_indices = @transform_1, window_bounds = array<i64: 16, 32>}, {pipeline_mode = #tpu.pipeline_mode<synchronous>, transform_indices = @transform_2, window_bounds = array<i64: 32, 32>}, {pipeline_mode = #tpu.pipeline_mode<synchronous>, transform_indices = @transform_3, window_bounds = array<i64: 32, 64>}, {pipeline_mode = #tpu.pipeline_mode<synchronous>, transform_indices = @transform_4, window_bounds = array<i64: 1, 64>}, {pipeline_mode = #tpu.pipeline_mode<synchronous>, transform_indices = @transform_5, window_bounds = array<i64: 64, 32>}, {pipeline_mode = #tpu.pipeline_mode<synchronous>, transform_indices = @transform_6, window_bounds = array<i64: 6, 32>}, {pipeline_mode = #tpu.pipeline_mode<synchronous>, transform_indices = @transform_7, window_bounds = array<i64: 32, 96>}, {pipeline_mode = #tpu.pipeline_mode<synchronous>, transform_indices = @transform_8, window_bounds = array<i64: 1, 96>}, {transform_indices = @transform_9, window_bounds = array<i64: 16, 32>}, {transform_indices = @transform_10, window_bounds = array<i64: 16, 96>}]} {
    %c0 = arith.constant 0 : index
    %c0_0 = arith.constant 0 : index
    %0 = vector.load %arg7[%c0, %c0_0] : memref<6x32xf32, #tpu.memory_space<vmem>>, vector<6x32xf32>
    %1 = vector.extract_strided_slice %0 {offsets = [0, 0], sizes = [1, 32], strides = [1, 1]} : vector<6x32xf32> to vector<1x32xf32>
    %2 = vector.extract_strided_slice %0 {offsets = [1, 0], sizes = [1, 32], strides = [1, 1]} : vector<6x32xf32> to vector<1x32xf32>
    %3 = vector.extract_strided_slice %0 {offsets = [2, 0], sizes = [1, 32], strides = [1, 1]} : vector<6x32xf32> to vector<1x32xf32>
    %4 = vector.extract_strided_slice %0 {offsets = [3, 0], sizes = [1, 32], strides = [1, 1]} : vector<6x32xf32> to vector<1x32xf32>
    %5 = vector.extract_strided_slice %0 {offsets = [4, 0], sizes = [1, 32], strides = [1, 1]} : vector<6x32xf32> to vector<1x32xf32>
    %6 = vector.extract_strided_slice %0 {offsets = [5, 0], sizes = [1, 32], strides = [1, 1]} : vector<6x32xf32> to vector<1x32xf32>
    %c0_1 = arith.constant 0 : index
    %c0_2 = arith.constant 0 : index
    %7 = vector.load %arg1[%c0_1, %c0_2] : memref<16x32xbf16, #tpu.memory_space<vmem>>, vector<16x32xbf16>
    %c0_3 = arith.constant 0 : index
    %c0_4 = arith.constant 0 : index
    %8 = vector.load %arg3[%c0_3, %c0_4] : memref<32x32xbf16, #tpu.memory_space<vmem>>, vector<32x32xbf16>
    %cst = arith.constant dense<0.000000e+00> : vector<16x32xf32>
    %9 = tpu.matmul %7, %8, %cst {dimension_numbers = #tpu.dot_dimension_numbers<[1], [0], [0], [1], [0, 0, 1, 1], [], []>} : vector<16x32xbf16>, vector<32x32xbf16>, vector<16x32xf32> -> vector<16x32xf32>
    %10 = vector.broadcast %1 : vector<1x32xf32> to vector<16x32xf32>
    %11 = arith.addf %9, %10 : vector<16x32xf32>
    %c0_5 = arith.constant 0 : index
    %c0_6 = arith.constant 0 : index
    %12 = vector.load %arg2[%c0_5, %c0_6] : memref<16x32xf32, #tpu.memory_space<vmem>>, vector<16x32xf32>
    %13 = arith.addf %12, %11 : vector<16x32xf32>
    %cst_7 = arith.constant dense<0.000000e+00> : vector<16xf32>
    %14 = vector.multi_reduction <add>, %13, %cst_7 [1] : vector<16x32xf32> to vector<16xf32>
    %15 = vector.shape_cast %14 : vector<16xf32> to vector<16x1xf32>
    %cst_8 = arith.constant 3.200000e+01 : f32
    %16 = vector.broadcast %cst_8 : f32 to vector<16x1xf32>
    %17 = arith.divf %15, %16 : vector<16x1xf32>
    %18 = vector.broadcast %17 : vector<16x1xf32> to vector<16x32xf32>
    %19 = arith.subf %13, %18 : vector<16x32xf32>
    %20 = arith.mulf %19, %19 : vector<16x32xf32>
    %cst_9 = arith.constant dense<0.000000e+00> : vector<16xf32>
    %21 = vector.multi_reduction <add>, %20, %cst_9 [1] : vector<16x32xf32> to vector<16xf32>
    %22 = vector.shape_cast %21 : vector<16xf32> to vector<16x1xf32>
    %cst_10 = arith.constant 3.200000e+01 : f32
    %23 = vector.broadcast %cst_10 : f32 to vector<16x1xf32>
    %24 = arith.divf %22, %23 : vector<16x1xf32>
    %cst_11 = arith.constant 9.99999974E-6 : f32
    %25 = vector.broadcast %cst_11 : f32 to vector<16x1xf32>
    %26 = arith.addf %24, %25 : vector<16x1xf32>
    %27 = math.rsqrt %26 : vector<16x1xf32>
    %28 = vector.broadcast %27 : vector<16x1xf32> to vector<16x32xf32>
    %29 = arith.mulf %19, %28 : vector<16x32xf32>
    %30 = vector.broadcast %2 : vector<1x32xf32> to vector<16x32xf32>
    %31 = arith.mulf %29, %30 : vector<16x32xf32>
    %32 = vector.broadcast %3 : vector<1x32xf32> to vector<16x32xf32>
    %33 = arith.addf %31, %32 : vector<16x32xf32>
    %34 = arith.truncf %33 : vector<16x32xf32> to vector<16x32xbf16>
    %c0_12 = arith.constant 0 : index
    %c0_13 = arith.constant 0 : index
    %35 = vector.load %arg4[%c0_12, %c0_13] : memref<32x64xbf16, #tpu.memory_space<vmem>>, vector<32x64xbf16>
    %cst_14 = arith.constant dense<0.000000e+00> : vector<16x64xf32>
    %36 = tpu.matmul %34, %35, %cst_14 {dimension_numbers = #tpu.dot_dimension_numbers<[1], [0], [0], [1], [0, 0, 1, 1], [], []>} : vector<16x32xbf16>, vector<32x64xbf16>, vector<16x64xf32> -> vector<16x64xf32>
    %c0_15 = arith.constant 0 : index
    %c0_16 = arith.constant 0 : index
    %37 = vector.load %arg5[%c0_15, %c0_16] : memref<1x64xf32, #tpu.memory_space<vmem>>, vector<1x64xf32>
    %38 = vector.broadcast %37 : vector<1x64xf32> to vector<16x64xf32>
    %39 = arith.addf %36, %38 : vector<16x64xf32>
    %cst_17 = arith.constant 5.000000e-01 : f32
    %40 = vector.broadcast %cst_17 : f32 to vector<16x64xf32>
    %41 = arith.mulf %40, %39 : vector<16x64xf32>
    %cst_18 = arith.constant 0.707106769 : f32
    %42 = vector.broadcast %cst_18 : f32 to vector<16x64xf32>
    %43 = arith.mulf %39, %42 : vector<16x64xf32>
    %44 = math.erf %43 : vector<16x64xf32>
    %cst_19 = arith.constant 1.000000e+00 : f32
    %45 = vector.broadcast %cst_19 : f32 to vector<16x64xf32>
    %46 = arith.addf %45, %44 : vector<16x64xf32>
    %47 = arith.mulf %41, %46 : vector<16x64xf32>
    %48 = arith.truncf %47 : vector<16x64xf32> to vector<16x64xbf16>
    %c0_20 = arith.constant 0 : index
    %c0_21 = arith.constant 0 : index
    %49 = vector.load %arg6[%c0_20, %c0_21] : memref<64x32xbf16, #tpu.memory_space<vmem>>, vector<64x32xbf16>
    %cst_22 = arith.constant dense<0.000000e+00> : vector<16x32xf32>
    %50 = tpu.matmul %48, %49, %cst_22 {dimension_numbers = #tpu.dot_dimension_numbers<[1], [0], [0], [1], [0, 0, 1, 1], [], []>} : vector<16x64xbf16>, vector<64x32xbf16>, vector<16x32xf32> -> vector<16x32xf32>
    %51 = vector.broadcast %4 : vector<1x32xf32> to vector<16x32xf32>
    %52 = arith.addf %50, %51 : vector<16x32xf32>
    %53 = arith.addf %33, %52 : vector<16x32xf32>
    %cst_23 = arith.constant dense<0.000000e+00> : vector<16xf32>
    %54 = vector.multi_reduction <add>, %53, %cst_23 [1] : vector<16x32xf32> to vector<16xf32>
    %55 = vector.shape_cast %54 : vector<16xf32> to vector<16x1xf32>
    %cst_24 = arith.constant 3.200000e+01 : f32
    %56 = vector.broadcast %cst_24 : f32 to vector<16x1xf32>
    %57 = arith.divf %55, %56 : vector<16x1xf32>
    %58 = vector.broadcast %57 : vector<16x1xf32> to vector<16x32xf32>
    %59 = arith.subf %53, %58 : vector<16x32xf32>
    %60 = arith.mulf %59, %59 : vector<16x32xf32>
    %cst_25 = arith.constant dense<0.000000e+00> : vector<16xf32>
    %61 = vector.multi_reduction <add>, %60, %cst_25 [1] : vector<16x32xf32> to vector<16xf32>
    %62 = vector.shape_cast %61 : vector<16xf32> to vector<16x1xf32>
    %cst_26 = arith.constant 3.200000e+01 : f32
    %63 = vector.broadcast %cst_26 : f32 to vector<16x1xf32>
    %64 = arith.divf %62, %63 : vector<16x1xf32>
    %cst_27 = arith.constant 9.99999974E-6 : f32
    %65 = vector.broadcast %cst_27 : f32 to vector<16x1xf32>
    %66 = arith.addf %64, %65 : vector<16x1xf32>
    %67 = math.rsqrt %66 : vector<16x1xf32>
    %68 = vector.broadcast %67 : vector<16x1xf32> to vector<16x32xf32>
    %69 = arith.mulf %59, %68 : vector<16x32xf32>
    %70 = vector.broadcast %5 : vector<1x32xf32> to vector<16x32xf32>
    %71 = arith.mulf %69, %70 : vector<16x32xf32>
    %72 = vector.broadcast %6 : vector<1x32xf32> to vector<16x32xf32>
    %73 = arith.addf %71, %72 : vector<16x32xf32>
    %c0_28 = arith.constant 0 : index
    %c0_29 = arith.constant 0 : index
    %74 = vector.load %arg10[%c0_28, %c0_29] : memref<16x32xf32, #tpu.memory_space<vmem>>, vector<16x32xf32>
    tpu.vector_store %arg10[%c0_28, %c0_29], %73 {strides = array<i32>} : memref<16x32xf32, #tpu.memory_space<vmem>>, vector<16x32xf32>,
    %75 = arith.truncf %73 : vector<16x32xf32> to vector<16x32xbf16>
    %c0_30 = arith.constant 0 : index
    %c0_31 = arith.constant 0 : index
    %76 = vector.load %arg8[%c0_30, %c0_31] : memref<32x96xbf16, #tpu.memory_space<vmem>>, vector<32x96xbf16>
    %cst_32 = arith.constant dense<0.000000e+00> : vector<16x96xf32>
    %77 = tpu.matmul %75, %76, %cst_32 {dimension_numbers = #tpu.dot_dimension_numbers<[1], [0], [0], [1], [0, 0, 1, 1], [], []>} : vector<16x32xbf16>, vector<32x96xbf16>, vector<16x96xf32> -> vector<16x96xf32>
    %c0_33 = arith.constant 0 : index
    %c0_34 = arith.constant 0 : index
    %78 = vector.load %arg9[%c0_33, %c0_34] : memref<1x96xf32, #tpu.memory_space<vmem>>, vector<1x96xf32>
    %79 = vector.broadcast %78 : vector<1x96xf32> to vector<16x96xf32>
    %80 = arith.addf %77, %79 : vector<16x96xf32>
    %81 = arith.truncf %80 : vector<16x96xf32> to vector<16x96xbf16>
    %c0_35 = arith.constant 0 : index
    %c0_36 = arith.constant 0 : index
    %82 = vector.load %arg11[%c0_35, %c0_36] : memref<16x96xbf16, #tpu.memory_space<vmem>>, vector<16x96xbf16>
    tpu.vector_store %arg11[%c0_35, %c0_36], %81 {strides = array<i32>} : memref<16x96xbf16, #tpu.memory_space<vmem>>, vector<16x96xbf16>,
    return
  }
  func.func @transform_0(%arg0: i32) -> (i32, i32) {
    %c0_i32 = arith.constant 0 : i32
    %c0_i32_0 = arith.constant 0 : i32
    return %arg0, %c0_i32 : i32, i32
  }
  func.func @transform_1(%arg0: i32) -> (i32, i32) {
    %c0_i32 = arith.constant 0 : i32
    %c0_i32_0 = arith.constant 0 : i32
    return %arg0, %c0_i32 : i32, i32
  }
  func.func @transform_2(%arg0: i32) -> (i32, i32) {
    %c0_i32 = arith.constant 0 : i32
    %c0_i32_0 = arith.constant 0 : i32
    %c0_i32_1 = arith.constant 0 : i32
    return %c0_i32, %c0_i32_0 : i32, i32
  }
  func.func @transform_3(%arg0: i32) -> (i32, i32) {
    %c0_i32 = arith.constant 0 : i32
    %c0_i32_0 = arith.constant 0 : i32
    %c0_i32_1 = arith.constant 0 : i32
    return %c0_i32, %c0_i32_0 : i32, i32
  }
  func.func @transform_4(%arg0: i32) -> (i32, i32) {
    %c0_i32 = arith.constant 0 : i32
    %c0_i32_0 = arith.constant 0 : i32
    %c0_i32_1 = arith.constant 0 : i32
    return %c0_i32, %c0_i32_0 : i32, i32
  }
  func.func @transform_5(%arg0: i32) -> (i32, i32) {
    %c0_i32 = arith.constant 0 : i32
    %c0_i32_0 = arith.constant 0 : i32
    %c0_i32_1 = arith.constant 0 : i32
    return %c0_i32, %c0_i32_0 : i32, i32
  }
  func.func @transform_6(%arg0: i32) -> (i32, i32) {
    %c0_i32 = arith.constant 0 : i32
    %c0_i32_0 = arith.constant 0 : i32
    %c0_i32_1 = arith.constant 0 : i32
    return %c0_i32, %c0_i32_0 : i32, i32
  }
  func.func @transform_7(%arg0: i32) -> (i32, i32) {
    %c0_i32 = arith.constant 0 : i32
    %c0_i32_0 = arith.constant 0 : i32
    %c0_i32_1 = arith.constant 0 : i32
    return %c0_i32, %c0_i32_0 : i32, i32
  }
  func.func @transform_8(%arg0: i32) -> (i32, i32) {
    %c0_i32 = arith.constant 0 : i32
    %c0_i32_0 = arith.constant 0 : i32
    %c0_i32_1 = arith.constant 0 : i32
    return %c0_i32, %c0_i32_0 : i32, i32
  }
  func.func @transform_9(%arg0: i32) -> (i32, i32) {
    %c0_i32 = arith.constant 0 : i32
    %c0_i32_0 = arith.constant 0 : i32
    return %arg0, %c0_i32 : i32, i32
  }
  func.func @transform_10(%arg0: i32) -> (i32, i32) {
    %c0_i32 = arith.constant 0 : i32
    %c0_i32_0 = arith.constant 0 : i32
    return %arg0, %c0_i32 : i32, i32
  }
}

module attributes {stable_mosaic.version = 11 : i64} {
  func.func @layer_last_kernel(%arg0: i32, %arg1: memref<16x32xbf16, #tpu.memory_space<vmem>>, %arg2: memref<16x32xf32, #tpu.memory_space<vmem>>, %arg3: memref<32x32xbf16, #tpu.memory_space<vmem>>, %arg4: memref<32x64xbf16, #tpu.memory_space<vmem>>, %arg5: memref<1x64xf32, #tpu.memory_space<vmem>>, %arg6: memref<64x32xbf16, #tpu.memory_space<vmem>>, %arg7: memref<6x32xf32, #tpu.memory_space<vmem>>, %arg8: memref<16x32xf32, #tpu.memory_space<vmem>>) attributes {dimension_semantics = [#tpu.dimension_semantics<parallel>], iteration_bounds = array<i64: 1>, scalar_prefetch = 0 : i64, scratch_operands = 0 : i64, tpu.core_type = #tpu.core_type<tc>, window_params = [{transform_indices = @transform_0, window_bounds = array<i64: 16, 32>}, {transform_indices = @transform_1, window_bounds = array<i64: 16, 32>}, {pipeline_mode = #tpu.pipeline_mode<synchronous>, transform_indices = @transform_2, window_bounds = array<i64: 32, 32>}, {pipeline_mode = #tpu.pipeline_mode<synchronous>, transform_indices = @transform_3, window_bounds = array<i64: 32, 64>}, {pipeline_mode = #tpu.pipeline_mode<synchronous>, transform_indices = @transform_4, window_bounds = array<i64: 1, 64>}, {pipeline_mode = #tpu.pipeline_mode<synchronous>, transform_indices = @transform_5, window_bounds = array<i64: 64, 32>}, {pipeline_mode = #tpu.pipeline_mode<synchronous>, transform_indices = @transform_6, window_bounds = array<i64: 6, 32>}, {transform_indices = @transform_7, window_bounds = array<i64: 16, 32>}]} {
    %c0 = arith.constant 0 : index
    %c0_0 = arith.constant 0 : index
    %0 = vector.load %arg7[%c0, %c0_0] : memref<6x32xf32, #tpu.memory_space<vmem>>, vector<6x32xf32>
    %1 = vector.extract_strided_slice %0 {offsets = [0, 0], sizes = [1, 32], strides = [1, 1]} : vector<6x32xf32> to vector<1x32xf32>
    %2 = vector.extract_strided_slice %0 {offsets = [1, 0], sizes = [1, 32], strides = [1, 1]} : vector<6x32xf32> to vector<1x32xf32>
    %3 = vector.extract_strided_slice %0 {offsets = [2, 0], sizes = [1, 32], strides = [1, 1]} : vector<6x32xf32> to vector<1x32xf32>
    %4 = vector.extract_strided_slice %0 {offsets = [3, 0], sizes = [1, 32], strides = [1, 1]} : vector<6x32xf32> to vector<1x32xf32>
    %5 = vector.extract_strided_slice %0 {offsets = [4, 0], sizes = [1, 32], strides = [1, 1]} : vector<6x32xf32> to vector<1x32xf32>
    %6 = vector.extract_strided_slice %0 {offsets = [5, 0], sizes = [1, 32], strides = [1, 1]} : vector<6x32xf32> to vector<1x32xf32>
    %c0_1 = arith.constant 0 : index
    %c0_2 = arith.constant 0 : index
    %7 = vector.load %arg1[%c0_1, %c0_2] : memref<16x32xbf16, #tpu.memory_space<vmem>>, vector<16x32xbf16>
    %c0_3 = arith.constant 0 : index
    %c0_4 = arith.constant 0 : index
    %8 = vector.load %arg3[%c0_3, %c0_4] : memref<32x32xbf16, #tpu.memory_space<vmem>>, vector<32x32xbf16>
    %cst = arith.constant dense<0.000000e+00> : vector<16x32xf32>
    %9 = tpu.matmul %7, %8, %cst {dimension_numbers = #tpu.dot_dimension_numbers<[1], [0], [0], [1], [0, 0, 1, 1], [], []>} : vector<16x32xbf16>, vector<32x32xbf16>, vector<16x32xf32> -> vector<16x32xf32>
    %10 = vector.broadcast %1 : vector<1x32xf32> to vector<16x32xf32>
    %11 = arith.addf %9, %10 : vector<16x32xf32>
    %c0_5 = arith.constant 0 : index
    %c0_6 = arith.constant 0 : index
    %12 = vector.load %arg2[%c0_5, %c0_6] : memref<16x32xf32, #tpu.memory_space<vmem>>, vector<16x32xf32>
    %13 = arith.addf %12, %11 : vector<16x32xf32>
    %cst_7 = arith.constant dense<0.000000e+00> : vector<16xf32>
    %14 = vector.multi_reduction <add>, %13, %cst_7 [1] : vector<16x32xf32> to vector<16xf32>
    %15 = vector.shape_cast %14 : vector<16xf32> to vector<16x1xf32>
    %cst_8 = arith.constant 3.200000e+01 : f32
    %16 = vector.broadcast %cst_8 : f32 to vector<16x1xf32>
    %17 = arith.divf %15, %16 : vector<16x1xf32>
    %18 = vector.broadcast %17 : vector<16x1xf32> to vector<16x32xf32>
    %19 = arith.subf %13, %18 : vector<16x32xf32>
    %20 = arith.mulf %19, %19 : vector<16x32xf32>
    %cst_9 = arith.constant dense<0.000000e+00> : vector<16xf32>
    %21 = vector.multi_reduction <add>, %20, %cst_9 [1] : vector<16x32xf32> to vector<16xf32>
    %22 = vector.shape_cast %21 : vector<16xf32> to vector<16x1xf32>
    %cst_10 = arith.constant 3.200000e+01 : f32
    %23 = vector.broadcast %cst_10 : f32 to vector<16x1xf32>
    %24 = arith.divf %22, %23 : vector<16x1xf32>
    %cst_11 = arith.constant 9.99999974E-6 : f32
    %25 = vector.broadcast %cst_11 : f32 to vector<16x1xf32>
    %26 = arith.addf %24, %25 : vector<16x1xf32>
    %27 = math.rsqrt %26 : vector<16x1xf32>
    %28 = vector.broadcast %27 : vector<16x1xf32> to vector<16x32xf32>
    %29 = arith.mulf %19, %28 : vector<16x32xf32>
    %30 = vector.broadcast %2 : vector<1x32xf32> to vector<16x32xf32>
    %31 = arith.mulf %29, %30 : vector<16x32xf32>
    %32 = vector.broadcast %3 : vector<1x32xf32> to vector<16x32xf32>
    %33 = arith.addf %31, %32 : vector<16x32xf32>
    %34 = arith.truncf %33 : vector<16x32xf32> to vector<16x32xbf16>
    %c0_12 = arith.constant 0 : index
    %c0_13 = arith.constant 0 : index
    %35 = vector.load %arg4[%c0_12, %c0_13] : memref<32x64xbf16, #tpu.memory_space<vmem>>, vector<32x64xbf16>
    %cst_14 = arith.constant dense<0.000000e+00> : vector<16x64xf32>
    %36 = tpu.matmul %34, %35, %cst_14 {dimension_numbers = #tpu.dot_dimension_numbers<[1], [0], [0], [1], [0, 0, 1, 1], [], []>} : vector<16x32xbf16>, vector<32x64xbf16>, vector<16x64xf32> -> vector<16x64xf32>
    %c0_15 = arith.constant 0 : index
    %c0_16 = arith.constant 0 : index
    %37 = vector.load %arg5[%c0_15, %c0_16] : memref<1x64xf32, #tpu.memory_space<vmem>>, vector<1x64xf32>
    %38 = vector.broadcast %37 : vector<1x64xf32> to vector<16x64xf32>
    %39 = arith.addf %36, %38 : vector<16x64xf32>
    %cst_17 = arith.constant 5.000000e-01 : f32
    %40 = vector.broadcast %cst_17 : f32 to vector<16x64xf32>
    %41 = arith.mulf %40, %39 : vector<16x64xf32>
    %cst_18 = arith.constant 0.707106769 : f32
    %42 = vector.broadcast %cst_18 : f32 to vector<16x64xf32>
    %43 = arith.mulf %39, %42 : vector<16x64xf32>
    %44 = math.erf %43 : vector<16x64xf32>
    %cst_19 = arith.constant 1.000000e+00 : f32
    %45 = vector.broadcast %cst_19 : f32 to vector<16x64xf32>
    %46 = arith.addf %45, %44 : vector<16x64xf32>
    %47 = arith.mulf %41, %46 : vector<16x64xf32>
    %48 = arith.truncf %47 : vector<16x64xf32> to vector<16x64xbf16>
    %c0_20 = arith.constant 0 : index
    %c0_21 = arith.constant 0 : index
    %49 = vector.load %arg6[%c0_20, %c0_21] : memref<64x32xbf16, #tpu.memory_space<vmem>>, vector<64x32xbf16>
    %cst_22 = arith.constant dense<0.000000e+00> : vector<16x32xf32>
    %50 = tpu.matmul %48, %49, %cst_22 {dimension_numbers = #tpu.dot_dimension_numbers<[1], [0], [0], [1], [0, 0, 1, 1], [], []>} : vector<16x64xbf16>, vector<64x32xbf16>, vector<16x32xf32> -> vector<16x32xf32>
    %51 = vector.broadcast %4 : vector<1x32xf32> to vector<16x32xf32>
    %52 = arith.addf %50, %51 : vector<16x32xf32>
    %53 = arith.addf %33, %52 : vector<16x32xf32>
    %cst_23 = arith.constant dense<0.000000e+00> : vector<16xf32>
    %54 = vector.multi_reduction <add>, %53, %cst_23 [1] : vector<16x32xf32> to vector<16xf32>
    %55 = vector.shape_cast %54 : vector<16xf32> to vector<16x1xf32>
    %cst_24 = arith.constant 3.200000e+01 : f32
    %56 = vector.broadcast %cst_24 : f32 to vector<16x1xf32>
    %57 = arith.divf %55, %56 : vector<16x1xf32>
    %58 = vector.broadcast %57 : vector<16x1xf32> to vector<16x32xf32>
    %59 = arith.subf %53, %58 : vector<16x32xf32>
    %60 = arith.mulf %59, %59 : vector<16x32xf32>
    %cst_25 = arith.constant dense<0.000000e+00> : vector<16xf32>
    %61 = vector.multi_reduction <add>, %60, %cst_25 [1] : vector<16x32xf32> to vector<16xf32>
    %62 = vector.shape_cast %61 : vector<16xf32> to vector<16x1xf32>
    %cst_26 = arith.constant 3.200000e+01 : f32
    %63 = vector.broadcast %cst_26 : f32 to vector<16x1xf32>
    %64 = arith.divf %62, %63 : vector<16x1xf32>
    %cst_27 = arith.constant 9.99999974E-6 : f32
    %65 = vector.broadcast %cst_27 : f32 to vector<16x1xf32>
    %66 = arith.addf %64, %65 : vector<16x1xf32>
    %67 = math.rsqrt %66 : vector<16x1xf32>
    %68 = vector.broadcast %67 : vector<16x1xf32> to vector<16x32xf32>
    %69 = arith.mulf %59, %68 : vector<16x32xf32>
    %70 = vector.broadcast %5 : vector<1x32xf32> to vector<16x32xf32>
    %71 = arith.mulf %69, %70 : vector<16x32xf32>
    %72 = vector.broadcast %6 : vector<1x32xf32> to vector<16x32xf32>
    %73 = arith.addf %71, %72 : vector<16x32xf32>
    %c0_28 = arith.constant 0 : index
    %c0_29 = arith.constant 0 : index
    %74 = vector.load %arg8[%c0_28, %c0_29] : memref<16x32xf32, #tpu.memory_space<vmem>>, vector<16x32xf32>
    tpu.vector_store %arg8[%c0_28, %c0_29], %73 {strides = array<i32>} : memref<16x32xf32, #tpu.memory_space<vmem>>, vector<16x32xf32>,
    return
  }
  func.func @transform_0(%arg0: i32) -> (i32, i32) {
    %c0_i32 = arith.constant 0 : i32
    %c0_i32_0 = arith.constant 0 : i32
    return %arg0, %c0_i32 : i32, i32
  }
  func.func @transform_1(%arg0: i32) -> (i32, i32) {
    %c0_i32 = arith.constant 0 : i32
    %c0_i32_0 = arith.constant 0 : i32
    return %arg0, %c0_i32 : i32, i32
  }
  func.func @transform_2(%arg0: i32) -> (i32, i32) {
    %c0_i32 = arith.constant 0 : i32
    %c0_i32_0 = arith.constant 0 : i32
    %c0_i32_1 = arith.constant 0 : i32
    return %c0_i32, %c0_i32_0 : i32, i32
  }
  func.func @transform_3(%arg0: i32) -> (i32, i32) {
    %c0_i32 = arith.constant 0 : i32
    %c0_i32_0 = arith.constant 0 : i32
    %c0_i32_1 = arith.constant 0 : i32
    return %c0_i32, %c0_i32_0 : i32, i32
  }
  func.func @transform_4(%arg0: i32) -> (i32, i32) {
    %c0_i32 = arith.constant 0 : i32
    %c0_i32_0 = arith.constant 0 : i32
    %c0_i32_1 = arith.constant 0 : i32
    return %c0_i32, %c0_i32_0 : i32, i32
  }
  func.func @transform_5(%arg0: i32) -> (i32, i32) {
    %c0_i32 = arith.constant 0 : i32
    %c0_i32_0 = arith.constant 0 : i32
    %c0_i32_1 = arith.constant 0 : i32
    return %c0_i32, %c0_i32_0 : i32, i32
  }
  func.func @transform_6(%arg0: i32) -> (i32, i32) {
    %c0_i32 = arith.constant 0 : i32
    %c0_i32_0 = arith.constant 0 : i32
    %c0_i32_1 = arith.constant 0 : i32
    return %c0_i32, %c0_i32_0 : i32, i32
  }
  func.func @transform_7(%arg0: i32) -> (i32, i32) {
    %c0_i32 = arith.constant 0 : i32
    %c0_i32_0 = arith.constant 0 : i32
    return %arg0, %c0_i32 : i32, i32
  }
}

</mosaic_0001>

<llo_original>
// kernel: transformer_encoder_forward.5
$region0: #{transformer_encoder_forward.5}
  #allocation0 [shape = 'u32[]', space=smem, size = 0x4, offset = 0x4, fixed_abs, tag = 'smem constant byte address 0x4 - core index']
  #allocation1 [shape = 'u32[144,128]{1,0:T(1,128)}', space=vmem, size = 0x12000, scoped, tag = 'internal scratch']
  %s0 = inlined_call_operand.vmem [shape: f32[16,32], index: 0, kind: input, shape index: {}]
  %s1 = inlined_call_operand.vmem [shape: f32[16,32], index: 1, kind: input, shape index: {}]
  %s2 = inlined_call_operand.vmem [shape: f32[2,32], index: 2, kind: input, shape index: {}]
  %s3 = inlined_call_operand.vmem [shape: bf16[32,96], index: 3, kind: input, shape index: {}]
  %s4 = inlined_call_operand.vmem [shape: f32[1,96], index: 4, kind: input, shape index: {}]
  %s5 = inlined_call_operand.vmem [shape: f32[16,32], index: 5, kind: output, shape index: {0}]
  %s6 = inlined_call_operand.vmem [shape: bf16[16,96], index: 6, kind: output, shape index: {1}]
  %7 = xla_tuple %s5, %s6
  %s8 = sld [smem:[#allocation0]]
  $region38: #{transformer_encoder_forward.5} parent=0
    _
  %s10 = ssub.s32 1, %s8
  %s11 = scalar_select 0, %s10, %s8
  // Predicated region
  $region2: #{transformer_encoder_forward.5} parent=0 // pred_check
    _
  $region3: #{transformer_encoder_forward.5} parent=0 // pred_check_branch
    %13 = sbr.rel (0) target = $region5
  $region4: #{transformer_encoder_forward.5} parent=0 // pred_region
    _
  $region5: #{transformer_encoder_forward.5} parent=0 // pred_fallthru
    _
  // Predicated region
  $region6: #{transformer_encoder_forward.5} parent=0 // pred_check
    _
  $region7: #{transformer_encoder_forward.5} parent=0 // pred_check_branch
    %15 = sbr.rel (0) target = $region9
  $region8: #{transformer_encoder_forward.5} parent=0 // pred_region
    _
  $region9: #{transformer_encoder_forward.5} parent=0 // pred_fallthru
    _
  // Predicated region
  $region10: #{transformer_encoder_forward.5} parent=0 // pred_check
    _
  $region11: #{transformer_encoder_forward.5} parent=0 // pred_check_branch
    %17 = sbr.rel (0) target = $region13
  $region12: #{transformer_encoder_forward.5} parent=0 // pred_region
    _
  $region13: #{transformer_encoder_forward.5} parent=0 // pred_fallthru
    _
  // Predicated region
  $region14: #{transformer_encoder_forward.5} parent=0 // pred_check
    _
  $region15: #{transformer_encoder_forward.5} parent=0 // pred_check_branch
    %19 = sbr.rel (0) target = $region17
  $region16: #{transformer_encoder_forward.5} parent=0 // pred_region
    _
  $region17: #{transformer_encoder_forward.5} parent=0 // pred_fallthru
    _
  // Predicated region
  $region18: #{transformer_encoder_forward.5} parent=0 // pred_check
    _
  $region19: #{transformer_encoder_forward.5} parent=0 // pred_check_branch
    %21 = sbr.rel (0) target = $region21
  $region20: #{transformer_encoder_forward.5} parent=0 // pred_region
    _
  $region21: #{transformer_encoder_forward.5} parent=0 // pred_fallthru
    _
  %v23 = vld [vmem:[%s2] sm:$0x3]
  %v24 = vld [vmem:[%s0] sm:$0xff]
  %v25 = vld [vmem:[%s0 + $0x8] sm:$0xff]
  %v26 = vld [vmem:[%s1] sm:$0xff]
  %v27 = vld [vmem:[%s1 + $0x8] sm:$0xff]
  %v28 = vadd.f32 %v24, %v26
  %v29 = vadd.f32 %v25, %v27
  %vm30 = vcmask 261120
  %v31 = vsel %vm30, %v28, 0.0
  %32 = vadd.xlane.f32.xlu0 %v31
  %v33 = vpop.xlane.xlu0 %32
  %v34 = vsel %vm30, %v29, 0.0
  %35 = vadd.xlane.f32.xlu0 %v34
  %v36 = vpop.xlane.xlu0 %35
  %v37 = vrcp.pop 32.0
  %v38 = vmul.f32 %v33, %v37
  %v39 = vmul.f32 %v36, %v37
  %v40 = vsub.f32 %v28, %v38
  %v41 = vsub.f32 %v29, %v39
  %v42 = vmul.f32 %v40, %v40
  %v43 = vmul.f32 %v41, %v41
  %v44 = vsel %vm30, %v42, 0.0
  %45 = vadd.xlane.f32.xlu0 %v44
  %v46 = vpop.xlane.xlu0 %45
  %v47 = vsel %vm30, %v43, 0.0
  %48 = vadd.xlane.f32.xlu0 %v47
  %v49 = vpop.xlane.xlu0 %48
  %v50 = vmul.f32 %v46, %v37
  %v51 = vmul.f32 %v49, %v37
  %v52 = vadd.f32 %v50, 1e-05
  %v53 = vadd.f32 %v51, 1e-05
  %v54 = vrsqrt.pop %v52
  %v55 = vrsqrt.pop %v53
  %v56 = vmul.f32 %v40, %v54
  %v57 = vmul.f32 %v41, %v55
  %v58 = vlaneseq
  %v59 = vshrl.u32 %v58, 7
  %v60 = vsub.s32 0, %v59
  %v61 = vrot.slane %v23, %v60
  %v62 = vmul.f32 %v56, %v61
  %v63 = vmul.f32 %v57, %v61
  %v64 = vlaneseq
  %v65 = vshrl.u32 %v64, 7
  %v66 = vsub.s32 1, %v65
  %v67 = vrot.slane %v23, %v66
  %v68 = vadd.f32 %v62, %v67
  %v69 = vadd.f32 %v63, %v67
  %70 = vst.msk [vmem:[%s5] sm:$0xff] %vm30, %v68
  %71 = vst.msk [vmem:[%s5 + $0x8] sm:$0xff] %vm30, %v69
  %v72 = vpack.c.bf16 %v69, %v68
  %v73 = vld [vmem:[%s3] sm:$0xf]
  %v74 = vld [vmem:[%s3 + $0x4] sm:$0xf]
  %v75 = vld [vmem:[%s3 + $0x8] sm:$0xf]
  %v76 = vld [vmem:[%s3 + $0xc] sm:$0xf]
  %v77 = vld [vmem:[%s4] sm:$0x1]
  %v79 = vlaneseq
  %v80 = vshrl.u32 %v79, 7
  %v81 = vsub.s32 0, %v80
  %v82 = vrot.slane %v77, %v81
  %v88 = vunpack.c.l.b16 %v73
  %v89 = vunpack.c.l.b16 %v74
  %v90 = vunpack.c.l.b16 %v75
  %v91 = vunpack.c.l.b16 %v76
  %v92 = vpack.c.b16 %v89, %v88
  %v93 = vpack.c.b16 %v91, %v90
  %v97 = vsel %vm30, %v72, 0
  %99 = vmatprep.subr.bf16.mxu0 0
  %100 = vmatpush1.bf16.msra.mxu0 0
  %101 = vmatprep.subr.bf16.mxu0 0
  %102 = vmatpush1.bf16.msra.mxu0 0
  %103 = vmatprep.subr.bf16.mxu0 0
  %104 = vmatpush1.bf16.msra.mxu0 0
  %105 = vmatprep.subr.bf16.mxu0 0
  %106 = vmatpush1.bf16.msra.mxu0 0
  %107 = vmatprep.subr.bf16.mxu0 0
  %108 = vmatpush1.bf16.msra.mxu0 0
  %109 = vmatprep.subr.bf16.mxu0 0
  %110 = vmatpush1.bf16.msra.mxu0 0
  %111 = vmatprep.subr.bf16.mxu0 0
  %112 = vmatpush1.bf16.msra.mxu0 %v93
  %113 = vmatprep.subr.bf16.mxu0 0
  %114 = vmatpush1.bf16.msra.mxu0 %v92
  %115 = vmatprep.subr.bf16.mxu0 0
  %116 = vmatpush2.bf16.msra.mxu0 0
  %117 = vmatprep.subr.bf16.mxu0 0
  %118 = vmatpush2.bf16.msra.mxu0 0
  %119 = vmatprep.subr.bf16.mxu0 0
  %120 = vmatpush2.bf16.msra.mxu0 0
  %121 = vmatprep.subr.bf16.mxu0 0
  %122 = vmatpush2.bf16.msra.mxu0 0
  %123 = vmatprep.subr.bf16.mxu0 0
  %124 = vmatpush2.bf16.msra.mxu0 0
  %125 = vmatprep.subr.bf16.mxu0 0
  %126 = vmatpush2.bf16.msra.mxu0 0
  %127 = vmatprep.subr.bf16.mxu0 0
  %128 = vmatpush2.bf16.msra.mxu0 0
  %129 = vmatprep.subr.bf16.mxu0 0
  %130 = vmatpush2.bf16.msra.mxu0 0
  %131 = vmatprep.mubr.bf16.mxu0 0
  %132 = vmatmul.mubr.bf16.gmra.mxu0 %v97
  %v133 = vpop.f32.mrf.mxu0
  %v134 = vadd.f32 %v82, %v133
  %v135 = vpop.f32.mrf.mxu0
  %v136 = vpop.f32.mrf.mxu0
  %v137 = vadd.f32 %v82, %v136
  %v138 = vpop.f32.mrf.mxu0
  %139 = vdwg.mxu0
  %v140 = vpack.c.bf16 %v137, %v134
  %v142 = vunpack.c.l.b16 %v140
  %v143 = vunpack.c.h.b16 %v140
  %v144 = vpack.c.b16 %v142, %v142
  %v145 = vpack.c.b16 %v143, %v143
  %vm148 = vcmask 781312
  %149 = vst.msk [vmem:[%s6] sm:$0xf] %vm148, %v144
  %150 = vst.msk [vmem:[%s6 + $0x4] sm:$0xf] %vm148, %v145
  // Predicated region
  $region22: #{transformer_encoder_forward.5} parent=0 // pred_check
    _
  $region23: #{transformer_encoder_forward.5} parent=0 // pred_check_branch
    %152 = sbr.rel (0) target = $region25
  $region24: #{transformer_encoder_forward.5} parent=0 // pred_region
    _
  $region25: #{transformer_encoder_forward.5} parent=0 // pred_fallthru
    _
  // Predicated region
  $region26: #{transformer_encoder_forward.5} parent=0 // pred_check
    _
  $region27: #{transformer_encoder_forward.5} parent=0 // pred_check_branch
    %154 = sbr.rel (0) target = $region29
  $region28: #{transformer_encoder_forward.5} parent=0 // pred_region
    _
  $region29: #{transformer_encoder_forward.5} parent=0 // pred_fallthru
    _
  // Predicated region
  $region30: #{transformer_encoder_forward.5} parent=0 // pred_check
    _
  $region31: #{transformer_encoder_forward.5} parent=0 // pred_check_branch
    %156 = sbr.rel (0) target = $region33
  $region32: #{transformer_encoder_forward.5} parent=0 // pred_region
    _
  $region33: #{transformer_encoder_forward.5} parent=0 // pred_fallthru
    _
  // Predicated region
  $region34: #{transformer_encoder_forward.5} parent=0 // pred_check
    _
  $region35: #{transformer_encoder_forward.5} parent=0 // pred_check_branch
    %158 = sbr.rel (0) target = $region37
  $region36: #{transformer_encoder_forward.5} parent=0 // pred_region
    _
  $region37: #{transformer_encoder_forward.5} parent=0 // pred_fallthru
    _

// kernel: transformer_encoder_forward.9
$region0: #{transformer_encoder_forward.9}
  #allocation0 [shape = 'u32[]', space=smem, size = 0x4, offset = 0x4, fixed_abs, tag = 'smem constant byte address 0x4 - core index']
  #allocation1 [shape = 'u32[144,128]{1,0:T(1,128)}', space=vmem, size = 0x12000, scoped, tag = 'internal scratch']
  %s0 = inlined_call_operand.vmem [shape: bf16[16,32], index: 0, kind: input, shape index: {}]
  %s1 = inlined_call_operand.vmem [shape: f32[16,32], index: 1, kind: input, shape index: {}]
  %s2 = inlined_call_operand.vmem [shape: bf16[32,32], index: 2, kind: input, shape index: {}]
  %s3 = inlined_call_operand.vmem [shape: bf16[32,64], index: 3, kind: input, shape index: {}]
  %s4 = inlined_call_operand.vmem [shape: f32[1,64], index: 4, kind: input, shape index: {}]
  %s5 = inlined_call_operand.vmem [shape: bf16[64,32], index: 5, kind: input, shape index: {}]
  %s6 = inlined_call_operand.vmem [shape: f32[6,32], index: 6, kind: input, shape index: {}]
  %s7 = inlined_call_operand.vmem [shape: f32[16,32], index: 7, kind: output, shape index: {}]
  %s8 = sld [smem:[#allocation0]]
  $region38: #{transformer_encoder_forward.9} parent=0
    _
  %s10 = ssub.s32 1, %s8
  %s11 = scalar_select 0, %s10, %s8
  // Predicated region
  $region2: #{transformer_encoder_forward.9} parent=0 // pred_check
    _
  $region3: #{transformer_encoder_forward.9} parent=0 // pred_check_branch
    %13 = sbr.rel (0) target = $region5
  $region4: #{transformer_encoder_forward.9} parent=0 // pred_region
    _
  $region5: #{transformer_encoder_forward.9} parent=0 // pred_fallthru
    _
  // Predicated region
  $region6: #{transformer_encoder_forward.9} parent=0 // pred_check
    _
  $region7: #{transformer_encoder_forward.9} parent=0 // pred_check_branch
    %15 = sbr.rel (0) target = $region9
  $region8: #{transformer_encoder_forward.9} parent=0 // pred_region
    _
  $region9: #{transformer_encoder_forward.9} parent=0 // pred_fallthru
    _
  // Predicated region
  $region10: #{transformer_encoder_forward.9} parent=0 // pred_check
    _
  $region11: #{transformer_encoder_forward.9} parent=0 // pred_check_branch
    %17 = sbr.rel (0) target = $region13
  $region12: #{transformer_encoder_forward.9} parent=0 // pred_region
    _
  $region13: #{transformer_encoder_forward.9} parent=0 // pred_fallthru
    _
  // Predicated region
  $region14: #{transformer_encoder_forward.9} parent=0 // pred_check
    _
  $region15: #{transformer_encoder_forward.9} parent=0 // pred_check_branch
    %19 = sbr.rel (0) target = $region17
  $region16: #{transformer_encoder_forward.9} parent=0 // pred_region
    _
  $region17: #{transformer_encoder_forward.9} parent=0 // pred_fallthru
    _
  // Predicated region
  $region18: #{transformer_encoder_forward.9} parent=0 // pred_check
    _
  $region19: #{transformer_encoder_forward.9} parent=0 // pred_check_branch
    %21 = sbr.rel (0) target = $region21
  $region20: #{transformer_encoder_forward.9} parent=0 // pred_region
    _
  $region21: #{transformer_encoder_forward.9} parent=0 // pred_fallthru
    _
  // Predicated region
  $region22: #{transformer_encoder_forward.9} parent=0 // pred_check
    _
  $region23: #{transformer_encoder_forward.9} parent=0 // pred_check_branch
    %23 = sbr.rel (0) target = $region25
  $region24: #{transformer_encoder_forward.9} parent=0 // pred_region
    _
  $region25: #{transformer_encoder_forward.9} parent=0 // pred_fallthru
    _
  // Predicated region
  $region26: #{transformer_encoder_forward.9} parent=0 // pred_check
    _
  $region27: #{transformer_encoder_forward.9} parent=0 // pred_check_branch
    %25 = sbr.rel (0) target = $region29
  $region28: #{transformer_encoder_forward.9} parent=0 // pred_region
    _
  $region29: #{transformer_encoder_forward.9} parent=0 // pred_fallthru
    _
  %v27 = vld [vmem:[%s6] sm:$0x3f]
  %v28 = vld [vmem:[%s0] sm:$0xf]
  %v29 = vld [vmem:[%s0 + $0x4] sm:$0xf]
  %v30 = vld [vmem:[%s2] sm:$0xf]
  %v31 = vld [vmem:[%s2 + $0x4] sm:$0xf]
  %v32 = vld [vmem:[%s2 + $0x8] sm:$0xf]
  %v33 = vld [vmem:[%s2 + $0xc] sm:$0xf]
  %v34 = vlaneseq
  %v35 = vshrl.u32 %v34, 7
  %v36 = vsub.s32 0, %v35
  %v37 = vrot.slane %v27, %v36
  %v40 = vunpack.c.l.b16 %v28
  %v41 = vunpack.c.l.b16 %v29
  %v42 = vpack.c.b16 %v41, %v40
  %v47 = vunpack.c.l.b16 %v30
  %v48 = vunpack.c.l.b16 %v31
  %v49 = vunpack.c.l.b16 %v32
  %v50 = vunpack.c.l.b16 %v33
  %v51 = vpack.c.b16 %v48, %v47
  %v52 = vpack.c.b16 %v50, %v49
  %vm55 = vcmask 261120
  %v57 = vsel %vm55, %v42, 0
  %59 = vmatprep.subr.bf16.mxu0 0
  %60 = vmatpush1.bf16.msra.mxu0 0
  %61 = vmatprep.subr.bf16.mxu0 0
  %62 = vmatpush1.bf16.msra.mxu0 0
  %63 = vmatprep.subr.bf16.mxu0 0
  %64 = vmatpush1.bf16.msra.mxu0 0
  %65 = vmatprep.subr.bf16.mxu0 0
  %66 = vmatpush1.bf16.msra.mxu0 0
  %67 = vmatprep.subr.bf16.mxu0 0
  %68 = vmatpush1.bf16.msra.mxu0 0
  %69 = vmatprep.subr.bf16.mxu0 0
  %70 = vmatpush1.bf16.msra.mxu0 0
  %71 = vmatprep.subr.bf16.mxu0 0
  %72 = vmatpush1.bf16.msra.mxu0 %v52
  %73 = vmatprep.subr.bf16.mxu0 0
  %74 = vmatpush1.bf16.msra.mxu0 %v51
  %75 = vmatprep.subr.bf16.mxu0 0
  %76 = vmatpush2.bf16.msra.mxu0 0
  %77 = vmatprep.subr.bf16.mxu0 0
  %78 = vmatpush2.bf16.msra.mxu0 0
  %79 = vmatprep.subr.bf16.mxu0 0
  %80 = vmatpush2.bf16.msra.mxu0 0
  %81 = vmatprep.subr.bf16.mxu0 0
  %82 = vmatpush2.bf16.msra.mxu0 0
  %83 = vmatprep.subr.bf16.mxu0 0
  %84 = vmatpush2.bf16.msra.mxu0 0
  %85 = vmatprep.subr.bf16.mxu0 0
  %86 = vmatpush2.bf16.msra.mxu0 0
  %87 = vmatprep.subr.bf16.mxu0 0
  %88 = vmatpush2.bf16.msra.mxu0 0
  %89 = vmatprep.subr.bf16.mxu0 0
  %90 = vmatpush2.bf16.msra.mxu0 0
  %91 = vmatprep.mubr.bf16.mxu0 0
  %92 = vmatmul.mubr.bf16.gmra.mxu0 %v57
  %v93 = vpop.f32.mrf.mxu0
  %v94 = vadd.f32 %v37, %v93
  %v95 = vpop.f32.mrf.mxu0
  %v96 = vpop.f32.mrf.mxu0
  %v97 = vadd.f32 %v37, %v96
  %v98 = vpop.f32.mrf.mxu0
  %99 = vdwg.mxu0
  %v100 = vld [vmem:[%s1] sm:$0xff]
  %v101 = vld [vmem:[%s1 + $0x8] sm:$0xff]
  %v102 = vadd.f32 %v100, %v94
  %v103 = vadd.f32 %v101, %v97
  %v104 = vsel %vm55, %v102, 0.0
  %105 = vadd.xlane.f32.xlu0 %v104
  %v106 = vpop.xlane.xlu0 %105
  %v107 = vsel %vm55, %v103, 0.0
  %108 = vadd.xlane.f32.xlu0 %v107
  %v109 = vpop.xlane.xlu0 %108
  %v110 = vrcp.pop 32.0
  %v111 = vmul.f32 %v106, %v110
  %v112 = vmul.f32 %v109, %v110
  %v113 = vsub.f32 %v102, %v111
  %v114 = vsub.f32 %v103, %v112
  %v115 = vmul.f32 %v113, %v113
  %v116 = vmul.f32 %v114, %v114
  %v117 = vsel %vm55, %v115, 0.0
  %118 = vadd.xlane.f32.xlu0 %v117
  %v119 = vpop.xlane.xlu0 %118
  %v120 = vsel %vm55, %v116, 0.0
  %121 = vadd.xlane.f32.xlu0 %v120
  %v122 = vpop.xlane.xlu0 %121
  %v123 = vmul.f32 %v119, %v110
  %v124 = vmul.f32 %v122, %v110
  %v125 = vadd.f32 %v123, 1e-05
  %v126 = vadd.f32 %v124, 1e-05
  %v127 = vrsqrt.pop %v125
  %v128 = vrsqrt.pop %v126
  %v129 = vmul.f32 %v113, %v127
  %v130 = vmul.f32 %v114, %v128
  %v131 = vlaneseq
  %v132 = vshrl.u32 %v131, 7
  %v133 = vsub.s32 1, %v132
  %v134 = vrot.slane %v27, %v133
  %v135 = vmul.f32 %v129, %v134
  %v136 = vmul.f32 %v130, %v134
  %v137 = vlaneseq
  %v138 = vshrl.u32 %v137, 7
  %v139 = vsub.s32 2, %v138
  %v140 = vrot.slane %v27, %v139
  %v141 = vadd.f32 %v135, %v140
  %v142 = vadd.f32 %v136, %v140
  %v143 = vpack.c.bf16 %v142, %v141
  %v144 = vld [vmem:[%s3] sm:$0xf]
  %v145 = vld [vmem:[%s3 + $0x4] sm:$0xf]
  %v146 = vld [vmem:[%s3 + $0x8] sm:$0xf]
  %v147 = vld [vmem:[%s3 + $0xc] sm:$0xf]
  %v148 = vld [vmem:[%s4] sm:$0x1]
  %v150 = vlaneseq
  %v151 = vshrl.u32 %v150, 7
  %v152 = vsub.s32 0, %v151
  %v153 = vrot.slane %v148, %v152
  %v159 = vunpack.c.l.b16 %v144
  %v160 = vunpack.c.l.b16 %v145
  %v161 = vunpack.c.l.b16 %v146
  %v162 = vunpack.c.l.b16 %v147
  %v163 = vpack.c.b16 %v160, %v159
  %v164 = vpack.c.b16 %v162, %v161
  %v168 = vsel %vm55, %v143, 0
  %170 = vmatprep.subr.bf16.mxu0 0
  %171 = vmatpush1.bf16.msra.mxu0 0
  %172 = vmatprep.subr.bf16.mxu0 0
  %173 = vmatpush1.bf16.msra.mxu0 0
  %174 = vmatprep.subr.bf16.mxu0 0
  %175 = vmatpush1.bf16.msra.mxu0 0
  %176 = vmatprep.subr.bf16.mxu0 0
  %177 = vmatpush1.bf16.msra.mxu0 0
  %178 = vmatprep.subr.bf16.mxu0 0
  %179 = vmatpush1.bf16.msra.mxu0 0
  %180 = vmatprep.subr.bf16.mxu0 0
  %181 = vmatpush1.bf16.msra.mxu0 0
  %182 = vmatprep.subr.bf16.mxu0 0
  %183 = vmatpush1.bf16.msra.mxu0 %v164
  %184 = vmatprep.subr.bf16.mxu0 0
  %185 = vmatpush1.bf16.msra.mxu0 %v163
  %186 = vmatprep.subr.bf16.mxu0 0
  %187 = vmatpush2.bf16.msra.mxu0 0
  %188 = vmatprep.subr.bf16.mxu0 0
  %189 = vmatpush2.bf16.msra.mxu0 0
  %190 = vmatprep.subr.bf16.mxu0 0
  %191 = vmatpush2.bf16.msra.mxu0 0
  %192 = vmatprep.subr.bf16.mxu0 0
  %193 = vmatpush2.bf16.msra.mxu0 0
  %194 = vmatprep.subr.bf16.mxu0 0
  %195 = vmatpush2.bf16.msra.mxu0 0
  %196 = vmatprep.subr.bf16.mxu0 0
  %197 = vmatpush2.bf16.msra.mxu0 0
  %198 = vmatprep.subr.bf16.mxu0 0
  %199 = vmatpush2.bf16.msra.mxu0 0
  %200 = vmatprep.subr.bf16.mxu0 0
  %201 = vmatpush2.bf16.msra.mxu0 0
  %202 = vmatprep.mubr.bf16.mxu0 0
  %203 = vmatmul.mubr.bf16.gmra.mxu0 %v168
  %v204 = vpop.f32.mrf.mxu0
  %v205 = vadd.f32 %v153, %v204
  %v206 = vpop.f32.mrf.mxu0
  %v207 = vpop.f32.mrf.mxu0
  %v208 = vadd.f32 %v153, %v207
  %v209 = vpop.f32.mrf.mxu0
  %210 = vdwg.mxu0
  %v211 = vmul.f32 %v205, 0.5
  %v212 = vmul.f32 %v208, 0.5
  %v213 = vmul.f32 %v205, 0.70710677
  %v214 = vmul.f32 %v208, 0.70710677
  %v215 = verf.f32.pop %v213
  %v216 = verf.f32.pop %v214
  %v217 = vadd.f32 %v215, 1.0
  %v218 = vadd.f32 %v216, 1.0
  %v219 = vmul.f32 %v211, %v217
  %v220 = vmul.f32 %v212, %v218
  %v221 = vpack.c.bf16 %v220, %v219
  %v222 = vld [vmem:[%s5] sm:$0xf]
  %v223 = vld [vmem:[%s5 + $0x4] sm:$0xf]
  %v224 = vld [vmem:[%s5 + $0x8] sm:$0xf]
  %v225 = vld [vmem:[%s5 + $0xc] sm:$0xf]
  %v226 = vld [vmem:[%s5 + $0x10] sm:$0xf]
  %v227 = vld [vmem:[%s5 + $0x14] sm:$0xf]
  %v228 = vld [vmem:[%s5 + $0x18] sm:$0xf]
  %v229 = vld [vmem:[%s5 + $0x1c] sm:$0xf]
  %v230 = vlaneseq
  %v231 = vshrl.u32 %v230, 7
  %v232 = vsub.s32 3, %v231
  %v233 = vrot.slane %v27, %v232
  %v242 = vunpack.c.l.b16 %v222
  %v243 = vunpack.c.l.b16 %v223
  %v244 = vunpack.c.l.b16 %v224
  %v245 = vunpack.c.l.b16 %v225
  %v246 = vunpack.c.l.b16 %v226
  %v247 = vunpack.c.l.b16 %v227
  %v248 = vunpack.c.l.b16 %v228
  %v249 = vunpack.c.l.b16 %v229
  %v250 = vpack.c.b16 %v243, %v242
  %v251 = vpack.c.b16 %v245, %v244
  %v252 = vpack.c.b16 %v247, %v246
  %v253 = vpack.c.b16 %v249, %v248
  %vm258 = vcmask 523264
  %v260 = vsel %vm258, %v221, 0
  %262 = vmatprep.subr.bf16.mxu0 0
  %263 = vmatpush1.bf16.msra.mxu0 0
  %264 = vmatprep.subr.bf16.mxu0 0
  %265 = vmatpush1.bf16.msra.mxu0 0
  %266 = vmatprep.subr.bf16.mxu0 0
  %267 = vmatpush1.bf16.msra.mxu0 0
  %268 = vmatprep.subr.bf16.mxu0 0
  %269 = vmatpush1.bf16.msra.mxu0 0
  %270 = vmatprep.subr.bf16.mxu0 0
  %271 = vmatpush1.bf16.msra.mxu0 %v253
  %272 = vmatprep.subr.bf16.mxu0 0
  %273 = vmatpush1.bf16.msra.mxu0 %v252
  %274 = vmatprep.subr.bf16.mxu0 0
  %275 = vmatpush1.bf16.msra.mxu0 %v251
  %276 = vmatprep.subr.bf16.mxu0 0
  %277 = vmatpush1.bf16.msra.mxu0 %v250
  %278 = vmatprep.subr.bf16.mxu0 0
  %279 = vmatpush2.bf16.msra.mxu0 0
  %280 = vmatprep.subr.bf16.mxu0 0
  %281 = vmatpush2.bf16.msra.mxu0 0
  %282 = vmatprep.subr.bf16.mxu0 0
  %283 = vmatpush2.bf16.msra.mxu0 0
  %284 = vmatprep.subr.bf16.mxu0 0
  %285 = vmatpush2.bf16.msra.mxu0 0
  %286 = vmatprep.subr.bf16.mxu0 0
  %287 = vmatpush2.bf16.msra.mxu0 0
  %288 = vmatprep.subr.bf16.mxu0 0
  %289 = vmatpush2.bf16.msra.mxu0 0
  %290 = vmatprep.subr.bf16.mxu0 0
  %291 = vmatpush2.bf16.msra.mxu0 0
  %292 = vmatprep.subr.bf16.mxu0 0
  %293 = vmatpush2.bf16.msra.mxu0 0
  %294 = vmatprep.mubr.bf16.mxu0 0
  %295 = vmatmul.mubr.bf16.gmra.mxu0 %v260
  %v296 = vpop.f32.mrf.mxu0
  %v297 = vadd.f32 %v233, %v296
  %v298 = vpop.f32.mrf.mxu0
  %v299 = vpop.f32.mrf.mxu0
  %v300 = vadd.f32 %v233, %v299
  %v301 = vpop.f32.mrf.mxu0
  %302 = vdwg.mxu0
  %v303 = vadd.f32 %v141, %v297
  %v304 = vadd.f32 %v142, %v300
  %v305 = vsel %vm55, %v303, 0.0
  %306 = vadd.xlane.f32.xlu0 %v305
  %v307 = vpop.xlane.xlu0 %306
  %v308 = vsel %vm55, %v304, 0.0
  %309 = vadd.xlane.f32.xlu0 %v308
  %v310 = vpop.xlane.xlu0 %309
  %v311 = vmul.f32 %v307, %v110
  %v312 = vmul.f32 %v310, %v110
  %v313 = vsub.f32 %v303, %v311
  %v314 = vsub.f32 %v304, %v312
  %v315 = vmul.f32 %v313, %v313
  %v316 = vmul.f32 %v314, %v314
  %v317 = vsel %vm55, %v315, 0.0
  %318 = vadd.xlane.f32.xlu0 %v317
  %v319 = vpop.xlane.xlu0 %318
  %v320 = vsel %vm55, %v316, 0.0
  %321 = vadd.xlane.f32.xlu0 %v320
  %v322 = vpop.xlane.xlu0 %321
  %v323 = vmul.f32 %v319, %v110
  %v324 = vmul.f32 %v322, %v110
  %v325 = vadd.f32 %v323, 1e-05
  %v326 = vadd.f32 %v324, 1e-05
  %v327 = vrsqrt.pop %v325
  %v328 = vrsqrt.pop %v326
  %v329 = vmul.f32 %v313, %v327
  %v330 = vmul.f32 %v314, %v328
  %v331 = vlaneseq
  %v332 = vshrl.u32 %v331, 7
  %v333 = vsub.s32 4, %v332
  %v334 = vrot.slane %v27, %v333
  %v335 = vmul.f32 %v329, %v334
  %v336 = vmul.f32 %v330, %v334
  %v337 = vlaneseq
  %v338 = vshrl.u32 %v337, 7
  %v339 = vsub.s32 5, %v338
  %v340 = vrot.slane %v27, %v339
  %v341 = vadd.f32 %v335, %v340
  %v342 = vadd.f32 %v336, %v340
  %343 = vst.msk [vmem:[%s7] sm:$0xff] %vm55, %v341
  %344 = vst.msk [vmem:[%s7 + $0x8] sm:$0xff] %vm55, %v342
  // Predicated region
  $region30: #{transformer_encoder_forward.9} parent=0 // pred_check
    _
  $region31: #{transformer_encoder_forward.9} parent=0 // pred_check_branch
    %346 = sbr.rel (0) target = $region33
  $region32: #{transformer_encoder_forward.9} parent=0 // pred_region
    _
  $region33: #{transformer_encoder_forward.9} parent=0 // pred_fallthru
    _
  // Predicated region
  $region34: #{transformer_encoder_forward.9} parent=0 // pred_check
    _
  $region35: #{transformer_encoder_forward.9} parent=0 // pred_check_branch
    %348 = sbr.rel (0) target = $region37
  $region36: #{transformer_encoder_forward.9} parent=0 // pred_region
    _
  $region37: #{transformer_encoder_forward.9} parent=0 // pred_fallthru
    _

// kernel: transformer_encoder_forward.7
$region0: #{transformer_encoder_forward.7}
  #allocation0 [shape = 'u32[]', space=smem, size = 0x4, offset = 0x4, fixed_abs, tag = 'smem constant byte address 0x4 - core index']
  #allocation1 [shape = 'u32[144,128]{1,0:T(1,128)}', space=vmem, size = 0x12000, scoped, tag = 'internal scratch']
  %s0 = inlined_call_operand.vmem [shape: bf16[16,32], index: 0, kind: input, shape index: {}]
  %s1 = inlined_call_operand.vmem [shape: f32[16,32], index: 1, kind: input, shape index: {}]
  %s2 = inlined_call_operand.vmem [shape: bf16[32,32], index: 2, kind: input, shape index: {}]
  %s3 = inlined_call_operand.vmem [shape: bf16[32,64], index: 3, kind: input, shape index: {}]
  %s4 = inlined_call_operand.vmem [shape: f32[1,64], index: 4, kind: input, shape index: {}]
  %s5 = inlined_call_operand.vmem [shape: bf16[64,32], index: 5, kind: input, shape index: {}]
  %s6 = inlined_call_operand.vmem [shape: f32[6,32], index: 6, kind: input, shape index: {}]
  %s7 = inlined_call_operand.vmem [shape: bf16[32,96], index: 7, kind: input, shape index: {}]
  %s8 = inlined_call_operand.vmem [shape: f32[1,96], index: 8, kind: input, shape index: {}]
  %s9 = inlined_call_operand.vmem [shape: f32[16,32], index: 9, kind: output, shape index: {0}]
  %s10 = inlined_call_operand.vmem [shape: bf16[16,96], index: 10, kind: output, shape index: {1}]
  %11 = xla_tuple %s9, %s10
  %s12 = sld [smem:[#allocation0]]
  $region54: #{transformer_encoder_forward.7} parent=0
    _
  %s14 = ssub.s32 1, %s12
  %s15 = scalar_select 0, %s14, %s12
  // Predicated region
  $region2: #{transformer_encoder_forward.7} parent=0 // pred_check
    _
  $region3: #{transformer_encoder_forward.7} parent=0 // pred_check_branch
    %17 = sbr.rel (0) target = $region5
  $region4: #{transformer_encoder_forward.7} parent=0 // pred_region
    _
  $region5: #{transformer_encoder_forward.7} parent=0 // pred_fallthru
    _
  // Predicated region
  $region6: #{transformer_encoder_forward.7} parent=0 // pred_check
    _
  $region7: #{transformer_encoder_forward.7} parent=0 // pred_check_branch
    %19 = sbr.rel (0) target = $region9
  $region8: #{transformer_encoder_forward.7} parent=0 // pred_region
    _
  $region9: #{transformer_encoder_forward.7} parent=0 // pred_fallthru
    _
  // Predicated region
  $region10: #{transformer_encoder_forward.7} parent=0 // pred_check
    _
  $region11: #{transformer_encoder_forward.7} parent=0 // pred_check_branch
    %21 = sbr.rel (0) target = $region13
  $region12: #{transformer_encoder_forward.7} parent=0 // pred_region
    _
  $region13: #{transformer_encoder_forward.7} parent=0 // pred_fallthru
    _
  // Predicated region
  $region14: #{transformer_encoder_forward.7} parent=0 // pred_check
    _
  $region15: #{transformer_encoder_forward.7} parent=0 // pred_check_branch
    %23 = sbr.rel (0) target = $region17
  $region16: #{transformer_encoder_forward.7} parent=0 // pred_region
    _
  $region17: #{transformer_encoder_forward.7} parent=0 // pred_fallthru
    _
  // Predicated region
  $region18: #{transformer_encoder_forward.7} parent=0 // pred_check
    _
  $region19: #{transformer_encoder_forward.7} parent=0 // pred_check_branch
    %25 = sbr.rel (0) target = $region21
  $region20: #{transformer_encoder_forward.7} parent=0 // pred_region
    _
  $region21: #{transformer_encoder_forward.7} parent=0 // pred_fallthru
    _
  // Predicated region
  $region22: #{transformer_encoder_forward.7} parent=0 // pred_check
    _
  $region23: #{transformer_encoder_forward.7} parent=0 // pred_check_branch
    %27 = sbr.rel (0) target = $region25
  $region24: #{transformer_encoder_forward.7} parent=0 // pred_region
    _
  $region25: #{transformer_encoder_forward.7} parent=0 // pred_fallthru
    _
  // Predicated region
  $region26: #{transformer_encoder_forward.7} parent=0 // pred_check
    _
  $region27: #{transformer_encoder_forward.7} parent=0 // pred_check_branch
    %29 = sbr.rel (0) target = $region29
  $region28: #{transformer_encoder_forward.7} parent=0 // pred_region
    _
  $region29: #{transformer_encoder_forward.7} parent=0 // pred_fallthru
    _
  // Predicated region
  $region30: #{transformer_encoder_forward.7} parent=0 // pred_check
    _
  $region31: #{transformer_encoder_forward.7} parent=0 // pred_check_branch
    %31 = sbr.rel (0) target = $region33
  $region32: #{transformer_encoder_forward.7} parent=0 // pred_region
    _
  $region33: #{transformer_encoder_forward.7} parent=0 // pred_fallthru
    _
  // Predicated region
  $region34: #{transformer_encoder_forward.7} parent=0 // pred_check
    _
  $region35: #{transformer_encoder_forward.7} parent=0 // pred_check_branch
    %33 = sbr.rel (0) target = $region37
  $region36: #{transformer_encoder_forward.7} parent=0 // pred_region
    _
  $region37: #{transformer_encoder_forward.7} parent=0 // pred_fallthru
    _
  %v35 = vld [vmem:[%s6] sm:$0x3f]
  %v36 = vld [vmem:[%s0] sm:$0xf]
  %v37 = vld [vmem:[%s0 + $0x4] sm:$0xf]
  %v38 = vld [vmem:[%s2] sm:$0xf]
  %v39 = vld [vmem:[%s2 + $0x4] sm:$0xf]
  %v40 = vld [vmem:[%s2 + $0x8] sm:$0xf]
  %v41 = vld [vmem:[%s2 + $0xc] sm:$0xf]
  %v42 = vlaneseq
  %v43 = vshrl.u32 %v42, 7
  %v44 = vsub.s32 0, %v43
  %v45 = vrot.slane %v35, %v44
  %v48 = vunpack.c.l.b16 %v36
  %v49 = vunpack.c.l.b16 %v37
  %v50 = vpack.c.b16 %v49, %v48
  %v55 = vunpack.c.l.b16 %v38
  %v56 = vunpack.c.l.b16 %v39
  %v57 = vunpack.c.l.b16 %v40
  %v58 = vunpack.c.l.b16 %v41
  %v59 = vpack.c.b16 %v56, %v55
  %v60 = vpack.c.b16 %v58, %v57
  %vm63 = vcmask 261120
  %v65 = vsel %vm63, %v50, 0
  %67 = vmatprep.subr.bf16.mxu0 0
  %68 = vmatpush1.bf16.msra.mxu0 0
  %69 = vmatprep.subr.bf16.mxu0 0
  %70 = vmatpush1.bf16.msra.mxu0 0
  %71 = vmatprep.subr.bf16.mxu0 0
  %72 = vmatpush1.bf16.msra.mxu0 0
  %73 = vmatprep.subr.bf16.mxu0 0
  %74 = vmatpush1.bf16.msra.mxu0 0
  %75 = vmatprep.subr.bf16.mxu0 0
  %76 = vmatpush1.bf16.msra.mxu0 0
  %77 = vmatprep.subr.bf16.mxu0 0
  %78 = vmatpush1.bf16.msra.mxu0 0
  %79 = vmatprep.subr.bf16.mxu0 0
  %80 = vmatpush1.bf16.msra.mxu0 %v60
  %81 = vmatprep.subr.bf16.mxu0 0
  %82 = vmatpush1.bf16.msra.mxu0 %v59
  %83 = vmatprep.subr.bf16.mxu0 0
  %84 = vmatpush2.bf16.msra.mxu0 0
  %85 = vmatprep.subr.bf16.mxu0 0
  %86 = vmatpush2.bf16.msra.mxu0 0
  %87 = vmatprep.subr.bf16.mxu0 0
  %88 = vmatpush2.bf16.msra.mxu0 0
  %89 = vmatprep.subr.bf16.mxu0 0
  %90 = vmatpush2.bf16.msra.mxu0 0
  %91 = vmatprep.subr.bf16.mxu0 0
  %92 = vmatpush2.bf16.msra.mxu0 0
  %93 = vmatprep.subr.bf16.mxu0 0
  %94 = vmatpush2.bf16.msra.mxu0 0
  %95 = vmatprep.subr.bf16.mxu0 0
  %96 = vmatpush2.bf16.msra.mxu0 0
  %97 = vmatprep.subr.bf16.mxu0 0
  %98 = vmatpush2.bf16.msra.mxu0 0
  %99 = vmatprep.mubr.bf16.mxu0 0
  %100 = vmatmul.mubr.bf16.gmra.mxu0 %v65
  %v101 = vpop.f32.mrf.mxu0
  %v102 = vadd.f32 %v45, %v101
  %v103 = vpop.f32.mrf.mxu0
  %v104 = vpop.f32.mrf.mxu0
  %v105 = vadd.f32 %v45, %v104
  %v106 = vpop.f32.mrf.mxu0
  %107 = vdwg.mxu0
  %v108 = vld [vmem:[%s1] sm:$0xff]
  %v109 = vld [vmem:[%s1 + $0x8] sm:$0xff]
  %v110 = vadd.f32 %v108, %v102
  %v111 = vadd.f32 %v109, %v105
  %v112 = vsel %vm63, %v110, 0.0
  %113 = vadd.xlane.f32.xlu0 %v112
  %v114 = vpop.xlane.xlu0 %113
  %v115 = vsel %vm63, %v111, 0.0
  %116 = vadd.xlane.f32.xlu0 %v115
  %v117 = vpop.xlane.xlu0 %116
  %v118 = vrcp.pop 32.0
  %v119 = vmul.f32 %v114, %v118
  %v120 = vmul.f32 %v117, %v118
  %v121 = vsub.f32 %v110, %v119
  %v122 = vsub.f32 %v111, %v120
  %v123 = vmul.f32 %v121, %v121
  %v124 = vmul.f32 %v122, %v122
  %v125 = vsel %vm63, %v123, 0.0
  %126 = vadd.xlane.f32.xlu0 %v125
  %v127 = vpop.xlane.xlu0 %126
  %v128 = vsel %vm63, %v124, 0.0
  %129 = vadd.xlane.f32.xlu0 %v128
  %v130 = vpop.xlane.xlu0 %129
  %v131 = vmul.f32 %v127, %v118
  %v132 = vmul.f32 %v130, %v118
  %v133 = vadd.f32 %v131, 1e-05
  %v134 = vadd.f32 %v132, 1e-05
  %v135 = vrsqrt.pop %v133
  %v136 = vrsqrt.pop %v134
  %v137 = vmul.f32 %v121, %v135
  %v138 = vmul.f32 %v122, %v136
  %v139 = vlaneseq
  %v140 = vshrl.u32 %v139, 7
  %v141 = vsub.s32 1, %v140
  %v142 = vrot.slane %v35, %v141
  %v143 = vmul.f32 %v137, %v142
  %v144 = vmul.f32 %v138, %v142
  %v145 = vlaneseq
  %v146 = vshrl.u32 %v145, 7
  %v147 = vsub.s32 2, %v146
  %v148 = vrot.slane %v35, %v147
  %v149 = vadd.f32 %v143, %v148
  %v150 = vadd.f32 %v144, %v148
  %v151 = vpack.c.bf16 %v150, %v149
  %v152 = vld [vmem:[%s3] sm:$0xf]
  %v153 = vld [vmem:[%s3 + $0x4] sm:$0xf]
  %v154 = vld [vmem:[%s3 + $0x8] sm:$0xf]
  %v155 = vld [vmem:[%s3 + $0xc] sm:$0xf]
  %v156 = vld [vmem:[%s4] sm:$0x1]
  %v158 = vlaneseq
  %v159 = vshrl.u32 %v158, 7
  %v160 = vsub.s32 0, %v159
  %v161 = vrot.slane %v156, %v160
  %v167 = vunpack.c.l.b16 %v152
  %v168 = vunpack.c.l.b16 %v153
  %v169 = vunpack.c.l.b16 %v154
  %v170 = vunpack.c.l.b16 %v155
  %v171 = vpack.c.b16 %v168, %v167
  %v172 = vpack.c.b16 %v170, %v169
  %v176 = vsel %vm63, %v151, 0
  %178 = vmatprep.subr.bf16.mxu0 0
  %179 = vmatpush1.bf16.msra.mxu0 0
  %180 = vmatprep.subr.bf16.mxu0 0
  %181 = vmatpush1.bf16.msra.mxu0 0
  %182 = vmatprep.subr.bf16.mxu0 0
  %183 = vmatpush1.bf16.msra.mxu0 0
  %184 = vmatprep.subr.bf16.mxu0 0
  %185 = vmatpush1.bf16.msra.mxu0 0
  %186 = vmatprep.subr.bf16.mxu0 0
  %187 = vmatpush1.bf16.msra.mxu0 0
  %188 = vmatprep.subr.bf16.mxu0 0
  %189 = vmatpush1.bf16.msra.mxu0 0
  %190 = vmatprep.subr.bf16.mxu0 0
  %191 = vmatpush1.bf16.msra.mxu0 %v172
  %192 = vmatprep.subr.bf16.mxu0 0
  %193 = vmatpush1.bf16.msra.mxu0 %v171
  %194 = vmatprep.subr.bf16.mxu0 0
  %195 = vmatpush2.bf16.msra.mxu0 0
  %196 = vmatprep.subr.bf16.mxu0 0
  %197 = vmatpush2.bf16.msra.mxu0 0
  %198 = vmatprep.subr.bf16.mxu0 0
  %199 = vmatpush2.bf16.msra.mxu0 0
  %200 = vmatprep.subr.bf16.mxu0 0
  %201 = vmatpush2.bf16.msra.mxu0 0
  %202 = vmatprep.subr.bf16.mxu0 0
  %203 = vmatpush2.bf16.msra.mxu0 0
  %204 = vmatprep.subr.bf16.mxu0 0
  %205 = vmatpush2.bf16.msra.mxu0 0
  %206 = vmatprep.subr.bf16.mxu0 0
  %207 = vmatpush2.bf16.msra.mxu0 0
  %208 = vmatprep.subr.bf16.mxu0 0
  %209 = vmatpush2.bf16.msra.mxu0 0
  %210 = vmatprep.mubr.bf16.mxu0 0
  %211 = vmatmul.mubr.bf16.gmra.mxu0 %v176
  %v212 = vpop.f32.mrf.mxu0
  %v213 = vadd.f32 %v161, %v212
  %v214 = vpop.f32.mrf.mxu0
  %v215 = vpop.f32.mrf.mxu0
  %v216 = vadd.f32 %v161, %v215
  %v217 = vpop.f32.mrf.mxu0
  %218 = vdwg.mxu0
  %v219 = vmul.f32 %v213, 0.5
  %v220 = vmul.f32 %v216, 0.5
  %v221 = vmul.f32 %v213, 0.70710677
  %v222 = vmul.f32 %v216, 0.70710677
  %v223 = verf.f32.pop %v221
  %v224 = verf.f32.pop %v222
  %v225 = vadd.f32 %v223, 1.0
  %v226 = vadd.f32 %v224, 1.0
  %v227 = vmul.f32 %v219, %v225
  %v228 = vmul.f32 %v220, %v226
  %v229 = vpack.c.bf16 %v228, %v227
  %v230 = vld [vmem:[%s5] sm:$0xf]
  %v231 = vld [vmem:[%s5 + $0x4] sm:$0xf]
  %v232 = vld [vmem:[%s5 + $0x8] sm:$0xf]
  %v233 = vld [vmem:[%s5 + $0xc] sm:$0xf]
  %v234 = vld [vmem:[%s5 + $0x10] sm:$0xf]
  %v235 = vld [vmem:[%s5 + $0x14] sm:$0xf]
  %v236 = vld [vmem:[%s5 + $0x18] sm:$0xf]
  %v237 = vld [vmem:[%s5 + $0x1c] sm:$0xf]
  %v238 = vlaneseq
  %v239 = vshrl.u32 %v238, 7
  %v240 = vsub.s32 3, %v239
  %v241 = vrot.slane %v35, %v240
  %v250 = vunpack.c.l.b16 %v230
  %v251 = vunpack.c.l.b16 %v231
  %v252 = vunpack.c.l.b16 %v232
  %v253 = vunpack.c.l.b16 %v233
  %v254 = vunpack.c.l.b16 %v234
  %v255 = vunpack.c.l.b16 %v235
  %v256 = vunpack.c.l.b16 %v236
  %v257 = vunpack.c.l.b16 %v237
  %v258 = vpack.c.b16 %v251, %v250
  %v259 = vpack.c.b16 %v253, %v252
  %v260 = vpack.c.b16 %v255, %v254
  %v261 = vpack.c.b16 %v257, %v256
  %vm266 = vcmask 523264
  %v268 = vsel %vm266, %v229, 0
  %270 = vmatprep.subr.bf16.mxu0 0
  %271 = vmatpush1.bf16.msra.mxu0 0
  %272 = vmatprep.subr.bf16.mxu0 0
  %273 = vmatpush1.bf16.msra.mxu0 0
  %274 = vmatprep.subr.bf16.mxu0 0
  %275 = vmatpush1.bf16.msra.mxu0 0
  %276 = vmatprep.subr.bf16.mxu0 0
  %277 = vmatpush1.bf16.msra.mxu0 0
  %278 = vmatprep.subr.bf16.mxu0 0
  %279 = vmatpush1.bf16.msra.mxu0 %v261
  %280 = vmatprep.subr.bf16.mxu0 0
  %281 = vmatpush1.bf16.msra.mxu0 %v260
  %282 = vmatprep.subr.bf16.mxu0 0
  %283 = vmatpush1.bf16.msra.mxu0 %v259
  %284 = vmatprep.subr.bf16.mxu0 0
  %285 = vmatpush1.bf16.msra.mxu0 %v258
  %286 = vmatprep.subr.bf16.mxu0 0
  %287 = vmatpush2.bf16.msra.mxu0 0
  %288 = vmatprep.subr.bf16.mxu0 0
  %289 = vmatpush2.bf16.msra.mxu0 0
  %290 = vmatprep.subr.bf16.mxu0 0
  %291 = vmatpush2.bf16.msra.mxu0 0
  %292 = vmatprep.subr.bf16.mxu0 0
  %293 = vmatpush2.bf16.msra.mxu0 0
  %294 = vmatprep.subr.bf16.mxu0 0
  %295 = vmatpush2.bf16.msra.mxu0 0
  %296 = vmatprep.subr.bf16.mxu0 0
  %297 = vmatpush2.bf16.msra.mxu0 0
  %298 = vmatprep.subr.bf16.mxu0 0
  %299 = vmatpush2.bf16.msra.mxu0 0
  %300 = vmatprep.subr.bf16.mxu0 0
  %301 = vmatpush2.bf16.msra.mxu0 0
  %302 = vmatprep.mubr.bf16.mxu0 0
  %303 = vmatmul.mubr.bf16.gmra.mxu0 %v268
  %v304 = vpop.f32.mrf.mxu0
  %v305 = vadd.f32 %v241, %v304
  %v306 = vpop.f32.mrf.mxu0
  %v307 = vpop.f32.mrf.mxu0
  %v308 = vadd.f32 %v241, %v307
  %v309 = vpop.f32.mrf.mxu0
  %310 = vdwg.mxu0
  %v311 = vadd.f32 %v149, %v305
  %v312 = vadd.f32 %v150, %v308
  %v313 = vsel %vm63, %v311, 0.0
  %314 = vadd.xlane.f32.xlu0 %v313
  %v315 = vpop.xlane.xlu0 %314
  %v316 = vsel %vm63, %v312, 0.0
  %317 = vadd.xlane.f32.xlu0 %v316
  %v318 = vpop.xlane.xlu0 %317
  %v319 = vmul.f32 %v315, %v118
  %v320 = vmul.f32 %v318, %v118
  %v321 = vsub.f32 %v311, %v319
  %v322 = vsub.f32 %v312, %v320
  %v323 = vmul.f32 %v321, %v321
  %v324 = vmul.f32 %v322, %v322
  %v325 = vsel %vm63, %v323, 0.0
  %326 = vadd.xlane.f32.xlu0 %v325
  %v327 = vpop.xlane.xlu0 %326
  %v328 = vsel %vm63, %v324, 0.0
  %329 = vadd.xlane.f32.xlu0 %v328
  %v330 = vpop.xlane.xlu0 %329
  %v331 = vmul.f32 %v327, %v118
  %v332 = vmul.f32 %v330, %v118
  %v333 = vadd.f32 %v331, 1e-05
  %v334 = vadd.f32 %v332, 1e-05
  %v335 = vrsqrt.pop %v333
  %v336 = vrsqrt.pop %v334
  %v337 = vmul.f32 %v321, %v335
  %v338 = vmul.f32 %v322, %v336
  %v339 = vlaneseq
  %v340 = vshrl.u32 %v339, 7
  %v341 = vsub.s32 4, %v340
  %v342 = vrot.slane %v35, %v341
  %v343 = vmul.f32 %v337, %v342
  %v344 = vmul.f32 %v338, %v342
  %v345 = vlaneseq
  %v346 = vshrl.u32 %v345, 7
  %v347 = vsub.s32 5, %v346
  %v348 = vrot.slane %v35, %v347
  %v349 = vadd.f32 %v343, %v348
  %v350 = vadd.f32 %v344, %v348
  %351 = vst.msk [vmem:[%s9] sm:$0xff] %vm63, %v349
  %352 = vst.msk [vmem:[%s9 + $0x8] sm:$0xff] %vm63, %v350
  %v353 = vpack.c.bf16 %v350, %v349
  %v354 = vld [vmem:[%s7] sm:$0xf]
  %v355 = vld [vmem:[%s7 + $0x4] sm:$0xf]
  %v356 = vld [vmem:[%s7 + $0x8] sm:$0xf]
  %v357 = vld [vmem:[%s7 + $0xc] sm:$0xf]
  %v358 = vld [vmem:[%s8] sm:$0x1]
  %v360 = vlaneseq
  %v361 = vshrl.u32 %v360, 7
  %v362 = vsub.s32 0, %v361
  %v363 = vrot.slane %v358, %v362
  %v369 = vunpack.c.l.b16 %v354
  %v370 = vunpack.c.l.b16 %v355
  %v371 = vunpack.c.l.b16 %v356
  %v372 = vunpack.c.l.b16 %v357
  %v373 = vpack.c.b16 %v370, %v369
  %v374 = vpack.c.b16 %v372, %v371
  %v378 = vsel %vm63, %v353, 0
  %380 = vmatprep.subr.bf16.mxu0 0
  %381 = vmatpush1.bf16.msra.mxu0 0
  %382 = vmatprep.subr.bf16.mxu0 0
  %383 = vmatpush1.bf16.msra.mxu0 0
  %384 = vmatprep.subr.bf16.mxu0 0
  %385 = vmatpush1.bf16.msra.mxu0 0
  %386 = vmatprep.subr.bf16.mxu0 0
  %387 = vmatpush1.bf16.msra.mxu0 0
  %388 = vmatprep.subr.bf16.mxu0 0
  %389 = vmatpush1.bf16.msra.mxu0 0
  %390 = vmatprep.subr.bf16.mxu0 0
  %391 = vmatpush1.bf16.msra.mxu0 0
  %392 = vmatprep.subr.bf16.mxu0 0
  %393 = vmatpush1.bf16.msra.mxu0 %v374
  %394 = vmatprep.subr.bf16.mxu0 0
  %395 = vmatpush1.bf16.msra.mxu0 %v373
  %396 = vmatprep.subr.bf16.mxu0 0
  %397 = vmatpush2.bf16.msra.mxu0 0
  %398 = vmatprep.subr.bf16.mxu0 0
  %399 = vmatpush2.bf16.msra.mxu0 0
  %400 = vmatprep.subr.bf16.mxu0 0
  %401 = vmatpush2.bf16.msra.mxu0 0
  %402 = vmatprep.subr.bf16.mxu0 0
  %403 = vmatpush2.bf16.msra.mxu0 0
  %404 = vmatprep.subr.bf16.mxu0 0
  %405 = vmatpush2.bf16.msra.mxu0 0
  %406 = vmatprep.subr.bf16.mxu0 0
  %407 = vmatpush2.bf16.msra.mxu0 0
  %408 = vmatprep.subr.bf16.mxu0 0
  %409 = vmatpush2.bf16.msra.mxu0 0
  %410 = vmatprep.subr.bf16.mxu0 0
  %411 = vmatpush2.bf16.msra.mxu0 0
  %412 = vmatprep.mubr.bf16.mxu0 0
  %413 = vmatmul.mubr.bf16.gmra.mxu0 %v378
  %v414 = vpop.f32.mrf.mxu0
  %v415 = vadd.f32 %v363, %v414
  %v416 = vpop.f32.mrf.mxu0
  %v417 = vpop.f32.mrf.mxu0
  %v418 = vadd.f32 %v363, %v417
  %v419 = vpop.f32.mrf.mxu0
  %420 = vdwg.mxu0
  %v421 = vpack.c.bf16 %v418, %v415
  %v423 = vunpack.c.l.b16 %v421
  %v424 = vunpack.c.h.b16 %v421
  %v425 = vpack.c.b16 %v423, %v423
  %v426 = vpack.c.b16 %v424, %v424
  %vm429 = vcmask 781312
  %430 = vst.msk [vmem:[%s10] sm:$0xf] %vm429, %v425
  %431 = vst.msk [vmem:[%s10 + $0x4] sm:$0xf] %vm429, %v426
  // Predicated region
  $region38: #{transformer_encoder_forward.7} parent=0 // pred_check
    _
  $region39: #{transformer_encoder_forward.7} parent=0 // pred_check_branch
    %433 = sbr.rel (0) target = $region41
  $region40: #{transformer_encoder_forward.7} parent=0 // pred_region
    _
  $region41: #{transformer_encoder_forward.7} parent=0 // pred_fallthru
    _
  // Predicated region
  $region42: #{transformer_encoder_forward.7} parent=0 // pred_check
    _
  $region43: #{transformer_encoder_forward.7} parent=0 // pred_check_branch
    %435 = sbr.rel (0) target = $region45
  $region44: #{transformer_encoder_forward.7} parent=0 // pred_region
    _
  $region45: #{transformer_encoder_forward.7} parent=0 // pred_fallthru
    _
  // Predicated region
  $region46: #{transformer_encoder_forward.7} parent=0 // pred_check
    _
  $region47: #{transformer_encoder_forward.7} parent=0 // pred_check_branch
    %437 = sbr.rel (0) target = $region49
  $region48: #{transformer_encoder_forward.7} parent=0 // pred_region
    _
  $region49: #{transformer_encoder_forward.7} parent=0 // pred_fallthru
    _
  // Predicated region
  $region50: #{transformer_encoder_forward.7} parent=0 // pred_check
    _
  $region51: #{transformer_encoder_forward.7} parent=0 // pred_check_branch
    %439 = sbr.rel (0) target = $region53
  $region52: #{transformer_encoder_forward.7} parent=0 // pred_region
    _
  $region53: #{transformer_encoder_forward.7} parent=0 // pred_fallthru
    _

// kernel: transformer_encoder_forward.6
$region0: #{transformer_encoder_forward.6}
  #allocation0 [shape = 'u32[]', space=smem, size = 0x4, offset = 0x4, fixed_abs, tag = 'smem constant byte address 0x4 - core index']
  #allocation1 [shape = 'u32[144,128]{1,0:T(1,128)}', space=vmem, size = 0x12000, scoped, tag = 'internal scratch']
  %s0 = inlined_call_operand.vmem [shape: bf16[16,96], index: 0, kind: input, shape index: {}]
  %s1 = inlined_call_operand.vmem [shape: f32[2,1,8], index: 1, kind: input, shape index: {}]
  %s2 = inlined_call_operand.vmem [shape: bf16[16,32], index: 2, kind: output, shape index: {}]
  %s3 = sld [smem:[#allocation0]]
  $region41: #{transformer_encoder_forward.6} parent=0
    _
  %s5 = ssub.s32 1, %s3
  %s6 = scalar_select 0, %s5, %s3
  loop: start=0, step=1, limit=4
  $region2: #{transformer_encoder_forward.6} parent=0 // loop_pre_header
    _
  $region3: #{transformer_encoder_forward.6} parent=0 // loop_header
    %s8 = sphi 0, %s12
    %p9 = scmp.ge.s32.totalorder %s8, 4
    %s15 = sphi 0, %s27
    %s16 = sphi 0, %s23
    %s17 = sphi 0, %s15
    %s18 = sphi 0, %s16
    %s19 = sphi 0, %s17
    %s20 = sphi 0, %s18
    %s30 = sphi 0, %s32
    %s33 = sphi 0, %s30
    %s34 = sphi 0, %s33
    %s50 = sphi 0, %s34
    %s56 = sphi 0, %s58
    %s59 = sphi 0, %s56
    %s60 = sphi 0, %s59
    %s76 = sphi 0, %s60
    %s84 = sphi 0, %s86
    %s87 = sphi 0, %s84
    %s88 = sphi 0, %s87
    %s104 = sphi 0, %s88
  $region4: #{transformer_encoder_forward.6} parent=0 // loop_header_branch
    %11 = sbr.rel (%p9) target = $region8
  $region5: #{transformer_encoder_forward.6} parent=0 // loop_body
    %s13 = ssub.s32 %s8, 1
    %s14 = ssub.s32 %s8, 2
    %s21 = sadd.s32 1, %s16
    %p22 = scmp.ge.s32.totalorder %s21, 1
    %s23 = scalar_select %p22, 0, %s21
    %s24 = sadd.s32 1, %s15
    %s25 = scalar_select %p22, %s24, %s15
    %p26 = scmp.ge.s32.totalorder %s25, 2
    %s27 = scalar_select %p26, 0, %s25
    %s28 = ssub.s32 %s15, %s27
    %p29 = scmp.eq.s32.totalorder %s28, 0
    %s31 = sadd.s32 %s30, 1
    %s32 = scalar_select %p29, %s30, %s31
    %p35 = pneg %p29
    %p36 = scmp.eq.s32.totalorder %s8, 1
    %p37 = por %p35, %p36
    %p38 = scmp.ne.s32.totalorder %s30, %s33
    %p39 = scmp.eq.s32.totalorder %s8, 0
    %p40 = por %p38, %p39
    %p41 = scmp.ne.s32.totalorder %s30, %s33
    %p42 = scmp.eq.s32.totalorder %s13, 1
    %p43 = por %p41, %p42
    %p44 = scmp.ne.s32.totalorder %s33, %s34
    %p45 = scmp.eq.s32.totalorder %s13, 0
    %p46 = por %p44, %p45
    %p47 = scmp.ne.s32.totalorder %s33, %s34
    %p48 = scmp.eq.s32.totalorder %s14, 1
    %p49 = por %p47, %p48
    %p51 = scmp.ne.s32.totalorder %s34, %s50
    %p52 = scmp.eq.s32.totalorder %s14, 0
    %p53 = por %p51, %p52
    %s54 = ssub.s32 %s15, %s27
    %p55 = scmp.eq.s32.totalorder %s54, 0
    %s57 = sadd.s32 %s56, 1
    %s58 = scalar_select %p55, %s56, %s57
    %p61 = pneg %p55
    %p62 = scmp.eq.s32.totalorder %s8, 1
    %p63 = por %p61, %p62
    %p64 = scmp.ne.s32.totalorder %s56, %s59
    %p65 = scmp.eq.s32.totalorder %s8, 0
    %p66 = por %p64, %p65
    %p67 = scmp.ne.s32.totalorder %s56, %s59
    %p68 = scmp.eq.s32.totalorder %s13, 1
    %p69 = por %p67, %p68
    %p70 = scmp.ne.s32.totalorder %s59, %s60
    %p71 = scmp.eq.s32.totalorder %s13, 0
    %p72 = por %p70, %p71
    %p73 = scmp.ne.s32.totalorder %s59, %s60
    %p74 = scmp.eq.s32.totalorder %s14, 1
    %p75 = por %p73, %p74
    %p77 = scmp.ne.s32.totalorder %s60, %s76
    %p78 = scmp.eq.s32.totalorder %s14, 0
    %p79 = por %p77, %p78
    %s80 = sadd.s32 %s15, %s16
    %s81 = sadd.s32 %s27, %s23
    %s82 = ssub.s32 %s80, %s81
    %p83 = scmp.eq.s32.totalorder %s82, 0
    %s85 = sadd.s32 %s84, 1
    %s86 = scalar_select %p83, %s84, %s85
    %p89 = pneg %p83
    %p90 = scmp.eq.s32.totalorder %s8, 1
    %p91 = por %p89, %p90
    %p92 = scmp.ne.s32.totalorder %s84, %s87
    %p93 = scmp.eq.s32.totalorder %s8, 0
    %p94 = por %p92, %p93
    %p95 = scmp.ne.s32.totalorder %s84, %s87
    %p96 = scmp.eq.s32.totalorder %s13, 1
    %p97 = por %p95, %p96
    %p98 = scmp.ne.s32.totalorder %s87, %s88
    %p99 = scmp.eq.s32.totalorder %s13, 0
    %p100 = por %p98, %p99
    %p101 = scmp.ne.s32.totalorder %s87, %s88
    %p102 = scmp.eq.s32.totalorder %s14, 1
    %p103 = por %p101, %p102
    %p105 = scmp.ne.s32.totalorder %s88, %s104
    %p106 = scmp.eq.s32.totalorder %s14, 0
    %p107 = por %p105, %p106
    %p108 = scmp.le.s32.totalorder 1, %s8
    %p109 = scmp.lt.s32.totalorder %s8, 3
    %p110 = pnand %p108, %p109
    %p111 = pneg %p110
    // Predicated region
    $region9: #{transformer_encoder_forward.6} parent=5 // pred_check
      _
    $region10: #{transformer_encoder_forward.6} parent=5 // pred_check_branch
      %113 = sbr.rel (%p110) target = $region12
    $region11: #{transformer_encoder_forward.6} parent=5 // pred_region
      %s114 = ssub.s32 %s8, 1
    $region12: #{transformer_encoder_forward.6} parent=5 // pred_fallthru
      _
    %p115 = scmp.lt.s32.totalorder %s8, 2
    // Predicated region
    $region13: #{transformer_encoder_forward.6} parent=5 // pred_check
      %p116 = pneg %p115
    $region14: #{transformer_encoder_forward.6} parent=5 // pred_check_branch
      %118 = sbr.rel (%p116) target = $region16
    $region15: #{transformer_encoder_forward.6} parent=5 // pred_region
      // Predicated region
      $region17: #{transformer_encoder_forward.6} parent=15 // pred_check
        %p119 = pneg %p40
      $region18: #{transformer_encoder_forward.6} parent=15 // pred_check_branch
        %121 = sbr.rel (%p119) target = $region20
      $region19: #{transformer_encoder_forward.6} parent=15 // pred_region
        %p122 = scmp.lt.s32.totalorder %s15, 1
        %s123 = scalar_select %p122, %s15, 1
        %s124 = smul.addr %s123, 4
        %s125 = scalar_lea.vmem %s0, %s124
      $region20: #{transformer_encoder_forward.6} parent=15 // pred_fallthru
        _
      // Predicated region
      $region21: #{transformer_encoder_forward.6} parent=15 // pred_check
        %p126 = pneg %p66
      $region22: #{transformer_encoder_forward.6} parent=15 // pred_check_branch
        %128 = sbr.rel (%p126) target = $region24
      $region23: #{transformer_encoder_forward.6} parent=15 // pred_region
        %p129 = scmp.lt.s32.totalorder %s15, 1
        %s130 = scalar_select %p129, %s15, 1
        %s131 = scalar_lea.vmem %s1, %s130
      $region24: #{transformer_encoder_forward.6} parent=15 // pred_fallthru
        _
    $region16: #{transformer_encoder_forward.6} parent=5 // pred_fallthru
      _
    %p132 = scmp.le.s32.totalorder 1, %s8
    %p133 = scmp.lt.s32.totalorder %s8, 3
    %p134 = pnand %p132, %p133
    %p135 = pneg %p134
    // Predicated region
    $region25: #{transformer_encoder_forward.6} parent=5 // pred_check
      _
    $region26: #{transformer_encoder_forward.6} parent=5 // pred_check_branch
      %137 = sbr.rel (%p134) target = $region28
    $region27: #{transformer_encoder_forward.6} parent=5 // pred_region
      %s138 = ssub.s32 %s8, 1
      %p139 = scmp.lt.s32.totalorder %s17, 1
      %s140 = scalar_select %p139, %s17, 1
      %s141 = smul.addr %s140, 4
      %s142 = scalar_lea.vmem %s0, %s141
      %p143 = pneg %p46
      %p144 = pneg %p43
      %p145 = scmp.lt.s32.totalorder %s17, 1
      %s146 = scalar_select %p145, %s17, 1
      %s147 = scalar_lea.vmem %s1, %s146
      %p148 = pneg %p72
      %p149 = pneg %p69
      %p150 = pneg %p100
      %p151 = pneg %p97
      %s152 = sadd.s32 %s17, %s18
      %p153 = scmp.lt.s32.totalorder %s152, 1
      %s154 = scalar_select %p153, %s152, 1
      %s155 = smul.addr %s154, 4
      %s156 = scalar_lea.vmem %s2, %s155
      %p157 = scmp.lt.s32.totalorder %s17, 1
      %s158 = scalar_select %p157, %s17, 1
      %s159 = smul.addr %s158, 4
      %s160 = scalar_lea.vmem %s0, %s159
      %p161 = scmp.lt.s32.totalorder %s17, 1
      %s162 = scalar_select %p161, %s17, 1
      %s163 = scalar_lea.vmem %s1, %s162
      %s164 = sadd.s32 %s17, %s18
      %p165 = scmp.lt.s32.totalorder %s164, 1
      %s166 = scalar_select %p165, %s164, 1
      %s167 = smul.addr %s166, 4
      %s168 = scalar_lea.vmem %s2, %s167
      %s169 = sadd.s32 %s17, %s18
      %v171 = vld [vmem:[%s163] sm:$0x1]
      %s172 = smul.u32 %s18, 8
      %s173 = sshra.s32 %s172, 3
      %s174 = sand.u32 %s172, 7
      %s175 = smul.addr %s173, 4
      %s176 = scalar_lea.vmem %s160, %s175
      %v177 = vld [vmem:[%s176] sm:$0xf]
      %v178 = vld [vmem:[%s160] sm:$0xf]
      %v180 = vlaneseq
      %v181 = vshrl.u32 %v180, 7
      %v182 = vsub.s32 0, %v181
      %v183 = vrot.slane %v171, %v182
      %v186 = vunpack.c.l.b16 %v178
      %v187 = vpack.c.b16 %v186, %v186
      %188 = vrot.lane.b32.xlu0 %v187, 96
      %v189 = vpop.permute.xlu0 %188
      %vm190 = vcmask 64512
      %v192 = vsel %vm190, %v177, 0
      %v195 = vsel %vm190, %v189, 0
      %197 = vmatprep.subr.bf16.mxu0 0
      %198 = vmatpush1.bf16.xpose.msra.mxu0 0
      %199 = vmatprep.subr.bf16.mxu0 0
      %200 = vmatpush1.bf16.xpose.msra.mxu0 0
      %201 = vmatprep.subr.bf16.mxu0 0
      %202 = vmatpush1.bf16.xpose.msra.mxu0 0
      %203 = vmatprep.subr.bf16.mxu0 0
      %204 = vmatpush1.bf16.xpose.msra.mxu0 0
      %205 = vmatprep.subr.bf16.mxu0 0
      %206 = vmatpush1.bf16.xpose.msra.mxu0 0
      %207 = vmatprep.subr.bf16.mxu0 0
      %208 = vmatpush1.bf16.xpose.msra.mxu0 0
      %209 = vmatprep.subr.bf16.mxu0 0
      %210 = vmatpush1.bf16.xpose.msra.mxu0 0
      %211 = vmatprep.subr.bf16.mxu0 0
      %212 = vmatpush1.bf16.xpose.msra.mxu0 %v195
      %213 = vmatprep.subr.bf16.mxu0 0
      %214 = vmatpush2.bf16.xpose.msra.mxu0 0
      %215 = vmatprep.subr.bf16.mxu0 0
      %216 = vmatpush2.bf16.xpose.msra.mxu0 0
      %217 = vmatprep.subr.bf16.mxu0 0
      %218 = vmatpush2.bf16.xpose.msra.mxu0 0
      %219 = vmatprep.subr.bf16.mxu0 0
      %220 = vmatpush2.bf16.xpose.msra.mxu0 0
      %221 = vmatprep.subr.bf16.mxu0 0
      %222 = vmatpush2.bf16.xpose.msra.mxu0 0
      %223 = vmatprep.subr.bf16.mxu0 0
      %224 = vmatpush2.bf16.xpose.msra.mxu0 0
      %225 = vmatprep.subr.bf16.mxu0 0
      %226 = vmatpush2.bf16.xpose.msra.mxu0 0
      %227 = vmatprep.subr.bf16.mxu0 0
      %228 = vmatpush2.bf16.xpose.msra.mxu0 0
      %229 = vmatprep.mubr.bf16.mxu0 0
      %230 = vmatmul.mubr.bf16.gmra.mxu0 %v192
      %v231 = vpop.f32.mrf.mxu0
      %v232 = vadd.f32 %v183, %v231
      %v233 = vpop.f32.mrf.mxu0
      %v234 = vpop.f32.mrf.mxu0
      %v235 = vpop.f32.mrf.mxu0
      %236 = vdwg.mxu0
      %v237 = vsel %vm190, %v232, -inf
      %238 = vmax.xlane.f32.xlu0 %v237
      %v239 = vpop.xlane.xlu0 %238
      %v240 = vsub.f32 %v232, %v239
      %v241 = vmul.f32 %v240, 1.442695
      %v242 = vpow.pop %v241
      %v243 = vsel %vm190, %v242, 0.0
      %244 = vadd.xlane.f32.xlu0 %v243
      %v245 = vpop.xlane.xlu0 %244
      %v246 = vrcp.pop %v245
      %v247 = vmul.f32 %v242, %v246
      %v248 = vpack.c.bf16 %v247, %v247
      %249 = vrot.lane.b32.xlu0 %v187, 64
      %v250 = vpop.permute.xlu0 %249
      %v252 = vsel %vm190, %v248, 0
      %vm254 = vcmask 1043456
      %v256 = vsel %vm254, %v250, 0
      %258 = vmatprep.subr.bf16.mxu0 0
      %259 = vmatpush1.bf16.msra.mxu0 0
      %260 = vmatprep.subr.bf16.mxu0 0
      %261 = vmatpush1.bf16.msra.mxu0 0
      %262 = vmatprep.subr.bf16.mxu0 0
      %263 = vmatpush1.bf16.msra.mxu0 0
      %264 = vmatprep.subr.bf16.mxu0 0
      %265 = vmatpush1.bf16.msra.mxu0 0
      %266 = vmatprep.subr.bf16.mxu0 0
      %267 = vmatpush1.bf16.msra.mxu0 0
      %268 = vmatprep.subr.bf16.mxu0 0
      %269 = vmatpush1.bf16.msra.mxu0 0
      %270 = vmatprep.subr.bf16.mxu0 0
      %271 = vmatpush1.bf16.msra.mxu0 0
      %272 = vmatprep.subr.bf16.mxu0 0
      %273 = vmatpush1.bf16.msra.mxu0 %v256
      %274 = vmatprep.subr.bf16.mxu0 0
      %275 = vmatpush2.bf16.msra.mxu0 0
      %276 = vmatprep.subr.bf16.mxu0 0
      %277 = vmatpush2.bf16.msra.mxu0 0
      %278 = vmatprep.subr.bf16.mxu0 0
      %279 = vmatpush2.bf16.msra.mxu0 0
      %280 = vmatprep.subr.bf16.mxu0 0
      %281 = vmatpush2.bf16.msra.mxu0 0
      %282 = vmatprep.subr.bf16.mxu0 0
      %283 = vmatpush2.bf16.msra.mxu0 0
      %284 = vmatprep.subr.bf16.mxu0 0
      %285 = vmatpush2.bf16.msra.mxu0 0
      %286 = vmatprep.subr.bf16.mxu0 0
      %287 = vmatpush2.bf16.msra.mxu0 0
      %288 = vmatprep.subr.bf16.mxu0 0
      %289 = vmatpush2.bf16.msra.mxu0 0
      %290 = vmatprep.mubr.bf16.mxu0 0
      %291 = vmatmul.mubr.bf16.gmra.mxu0 %v252
      %v292 = vpop.f32.mrf.mxu0
      %v293 = vadd.f32 0.0, %v292
      %v294 = vpop.f32.mrf.mxu0
      %v295 = vpop.f32.mrf.mxu0
      %v296 = vpop.f32.mrf.mxu0
      %297 = vdwg.mxu0
      %v298 = vpack.c.bf16 %v293, %v293
      %vm299 = vcmask 60416
      %300 = vst.msk [vmem:[%s168] sm:$0xf] %vm299, %v298
      %v301 = vld [vmem:[%s176] sm:$0xf]
      %v302 = vld [vmem:[%s160] sm:$0xf]
      %v304 = vunpack.c.l.b16 %v301
      %v305 = vpack.c.b16 %v304, %v304
      %306 = vrot.lane.b32.xlu0 %v305, 120
      %v307 = vpop.permute.xlu0 %306
      %v309 = vunpack.c.l.b16 %v302
      %v310 = vpack.c.b16 %v309, %v309
      %311 = vrot.lane.b32.xlu0 %v310, 88
      %v312 = vpop.permute.xlu0 %311
      %v314 = vsel %vm190, %v307, 0
      %v317 = vsel %vm190, %v312, 0
      %319 = vmatprep.subr.bf16.mxu0 0
      %320 = vmatpush1.bf16.xpose.msra.mxu0 0
      %321 = vmatprep.subr.bf16.mxu0 0
      %322 = vmatpush1.bf16.xpose.msra.mxu0 0
      %323 = vmatprep.subr.bf16.mxu0 0
      %324 = vmatpush1.bf16.xpose.msra.mxu0 0
      %325 = vmatprep.subr.bf16.mxu0 0
      %326 = vmatpush1.bf16.xpose.msra.mxu0 0
      %327 = vmatprep.subr.bf16.mxu0 0
      %328 = vmatpush1.bf16.xpose.msra.mxu0 0
      %329 = vmatprep.subr.bf16.mxu0 0
      %330 = vmatpush1.bf16.xpose.msra.mxu0 0
      %331 = vmatprep.subr.bf16.mxu0 0
      %332 = vmatpush1.bf16.xpose.msra.mxu0 0
      %333 = vmatprep.subr.bf16.mxu0 0
      %334 = vmatpush1.bf16.xpose.msra.mxu0 %v317
      %335 = vmatprep.subr.bf16.mxu0 0
      %336 = vmatpush2.bf16.xpose.msra.mxu0 0
      %337 = vmatprep.subr.bf16.mxu0 0
      %338 = vmatpush2.bf16.xpose.msra.mxu0 0
      %339 = vmatprep.subr.bf16.mxu0 0
      %340 = vmatpush2.bf16.xpose.msra.mxu0 0
      %341 = vmatprep.subr.bf16.mxu0 0
      %342 = vmatpush2.bf16.xpose.msra.mxu0 0
      %343 = vmatprep.subr.bf16.mxu0 0
      %344 = vmatpush2.bf16.xpose.msra.mxu0 0
      %345 = vmatprep.subr.bf16.mxu0 0
      %346 = vmatpush2.bf16.xpose.msra.mxu0 0
      %347 = vmatprep.subr.bf16.mxu0 0
      %348 = vmatpush2.bf16.xpose.msra.mxu0 0
      %349 = vmatprep.subr.bf16.mxu0 0
      %350 = vmatpush2.bf16.xpose.msra.mxu0 0
      %351 = vmatprep.mubr.bf16.mxu0 0
      %352 = vmatmul.mubr.bf16.gmra.mxu0 %v314
      %v353 = vpop.f32.mrf.mxu0
      %v354 = vadd.f32 %v183, %v353
      %v355 = vpop.f32.mrf.mxu0
      %v356 = vpop.f32.mrf.mxu0
      %v357 = vpop.f32.mrf.mxu0
      %358 = vdwg.mxu0
      %v359 = vsel %vm190, %v354, -inf
      %360 = vmax.xlane.f32.xlu0 %v359
      %v361 = vpop.xlane.xlu0 %360
      %v362 = vsub.f32 %v354, %v361
      %v363 = vmul.f32 %v362, 1.442695
      %v364 = vpow.pop %v363
      %v365 = vsel %vm190, %v364, 0.0
      %366 = vadd.xlane.f32.xlu0 %v365
      %v367 = vpop.xlane.xlu0 %366
      %v368 = vrcp.pop %v367
      %v369 = vmul.f32 %v364, %v368
      %v370 = vpack.c.bf16 %v369, %v369
      %371 = vrot.lane.b32.xlu0 %v310, 56
      %v372 = vpop.permute.xlu0 %371
      %v374 = vsel %vm190, %v370, 0
      %v377 = vsel %vm254, %v372, 0
      %379 = vmatprep.subr.bf16.mxu0 0
      %380 = vmatpush1.bf16.msra.mxu0 0
      %381 = vmatprep.subr.bf16.mxu0 0
      %382 = vmatpush1.bf16.msra.mxu0 0
      %383 = vmatprep.subr.bf16.mxu0 0
      %384 = vmatpush1.bf16.msra.mxu0 0
      %385 = vmatprep.subr.bf16.mxu0 0
      %386 = vmatpush1.bf16.msra.mxu0 0
      %387 = vmatprep.subr.bf16.mxu0 0
      %388 = vmatpush1.bf16.msra.mxu0 0
      %389 = vmatprep.subr.bf16.mxu0 0
      %390 = vmatpush1.bf16.msra.mxu0 0
      %391 = vmatprep.subr.bf16.mxu0 0
      %392 = vmatpush1.bf16.msra.mxu0 0
      %393 = vmatprep.subr.bf16.mxu0 0
      %394 = vmatpush1.bf16.msra.mxu0 %v377
      %395 = vmatprep.subr.bf16.mxu0 0
      %396 = vmatpush2.bf16.msra.mxu0 0
      %397 = vmatprep.subr.bf16.mxu0 0
      %398 = vmatpush2.bf16.msra.mxu0 0
      %399 = vmatprep.subr.bf16.mxu0 0
      %400 = vmatpush2.bf16.msra.mxu0 0
      %401 = vmatprep.subr.bf16.mxu0 0
      %402 = vmatpush2.bf16.msra.mxu0 0
      %403 = vmatprep.subr.bf16.mxu0 0
      %404 = vmatpush2.bf16.msra.mxu0 0
      %405 = vmatprep.subr.bf16.mxu0 0
      %406 = vmatpush2.bf16.msra.mxu0 0
      %407 = vmatprep.subr.bf16.mxu0 0
      %408 = vmatpush2.bf16.msra.mxu0 0
      %409 = vmatprep.subr.bf16.mxu0 0
      %410 = vmatpush2.bf16.msra.mxu0 0
      %411 = vmatprep.mubr.bf16.mxu0 0
      %412 = vmatmul.mubr.bf16.gmra.mxu0 %v374
      %v413 = vpop.f32.mrf.mxu0
      %v414 = vadd.f32 0.0, %v413
      %v415 = vpop.f32.mrf.mxu0
      %v416 = vpop.f32.mrf.mxu0
      %v417 = vpop.f32.mrf.mxu0
      %418 = vdwg.mxu0
      %v419 = vpack.c.bf16 %v414, %v414
      %v421 = vunpack.c.l.b16 %v419
      %v422 = vpack.c.b16 %v421, %v421
      %423 = vrot.lane.b32.xlu0 %v422, 8
      %v424 = vpop.permute.xlu0 %423
      %vm426 = vcmask 126016
      %427 = vst.msk [vmem:[%s168] sm:$0xf] %vm426, %v424
      %v428 = vld [vmem:[%s176] sm:$0xf]
      %v429 = vld [vmem:[%s160] sm:$0xf]
      %v431 = vunpack.c.l.b16 %v428
      %v432 = vpack.c.b16 %v431, %v431
      %433 = vrot.lane.b32.xlu0 %v432, 112
      %v434 = vpop.permute.xlu0 %433
      %v436 = vunpack.c.l.b16 %v429
      %v437 = vpack.c.b16 %v436, %v436
      %438 = vrot.lane.b32.xlu0 %v437, 80
      %v439 = vpop.permute.xlu0 %438
      %v441 = vsel %vm190, %v434, 0
      %v444 = vsel %vm190, %v439, 0
      %446 = vmatprep.subr.bf16.mxu0 0
      %447 = vmatpush1.bf16.xpose.msra.mxu0 0
      %448 = vmatprep.subr.bf16.mxu0 0
      %449 = vmatpush1.bf16.xpose.msra.mxu0 0
      %450 = vmatprep.subr.bf16.mxu0 0
      %451 = vmatpush1.bf16.xpose.msra.mxu0 0
      %452 = vmatprep.subr.bf16.mxu0 0
      %453 = vmatpush1.bf16.xpose.msra.mxu0 0
      %454 = vmatprep.subr.bf16.mxu0 0
      %455 = vmatpush1.bf16.xpose.msra.mxu0 0
      %456 = vmatprep.subr.bf16.mxu0 0
      %457 = vmatpush1.bf16.xpose.msra.mxu0 0
      %458 = vmatprep.subr.bf16.mxu0 0
      %459 = vmatpush1.bf16.xpose.msra.mxu0 0
      %460 = vmatprep.subr.bf16.mxu0 0
      %461 = vmatpush1.bf16.xpose.msra.mxu0 %v444
      %462 = vmatprep.subr.bf16.mxu0 0
      %463 = vmatpush2.bf16.xpose.msra.mxu0 0
      %464 = vmatprep.subr.bf16.mxu0 0
      %465 = vmatpush2.bf16.xpose.msra.mxu0 0
      %466 = vmatprep.subr.bf16.mxu0 0
      %467 = vmatpush2.bf16.xpose.msra.mxu0 0
      %468 = vmatprep.subr.bf16.mxu0 0
      %469 = vmatpush2.bf16.xpose.msra.mxu0 0
      %470 = vmatprep.subr.bf16.mxu0 0
      %471 = vmatpush2.bf16.xpose.msra.mxu0 0
      %472 = vmatprep.subr.bf16.mxu0 0
      %473 = vmatpush2.bf16.xpose.msra.mxu0 0
      %474 = vmatprep.subr.bf16.mxu0 0
      %475 = vmatpush2.bf16.xpose.msra.mxu0 0
      %476 = vmatprep.subr.bf16.mxu0 0
      %477 = vmatpush2.bf16.xpose.msra.mxu0 0
      %478 = vmatprep.mubr.bf16.mxu0 0
      %479 = vmatmul.mubr.bf16.gmra.mxu0 %v441
      %v480 = vpop.f32.mrf.mxu0
      %v481 = vadd.f32 %v183, %v480
      %v482 = vpop.f32.mrf.mxu0
      %v483 = vpop.f32.mrf.mxu0
      %v484 = vpop.f32.mrf.mxu0
      %485 = vdwg.mxu0
      %v486 = vsel %vm190, %v481, -inf
      %487 = vmax.xlane.f32.xlu0 %v486
      %v488 = vpop.xlane.xlu0 %487
      %v489 = vsub.f32 %v481, %v488
      %v490 = vmul.f32 %v489, 1.442695
      %v491 = vpow.pop %v490
      %v492 = vsel %vm190, %v491, 0.0
      %493 = vadd.xlane.f32.xlu0 %v492
      %v494 = vpop.xlane.xlu0 %493
      %v495 = vrcp.pop %v494
      %v496 = vmul.f32 %v491, %v495
      %v497 = vpack.c.bf16 %v496, %v496
      %498 = vrot.lane.b32.xlu0 %v437, 48
      %v499 = vpop.permute.xlu0 %498
      %v501 = vsel %vm190, %v497, 0
      %v504 = vsel %vm254, %v499, 0
      %506 = vmatprep.subr.bf16.mxu0 0
      %507 = vmatpush1.bf16.msra.mxu0 0
      %508 = vmatprep.subr.bf16.mxu0 0
      %509 = vmatpush1.bf16.msra.mxu0 0
      %510 = vmatprep.subr.bf16.mxu0 0
      %511 = vmatpush1.bf16.msra.mxu0 0
      %512 = vmatprep.subr.bf16.mxu0 0
      %513 = vmatpush1.bf16.msra.mxu0 0
      %514 = vmatprep.subr.bf16.mxu0 0
      %515 = vmatpush1.bf16.msra.mxu0 0
      %516 = vmatprep.subr.bf16.mxu0 0
      %517 = vmatpush1.bf16.msra.mxu0 0
      %518 = vmatprep.subr.bf16.mxu0 0
      %519 = vmatpush1.bf16.msra.mxu0 0
      %520 = vmatprep.subr.bf16.mxu0 0
      %521 = vmatpush1.bf16.msra.mxu0 %v504
      %522 = vmatprep.subr.bf16.mxu0 0
      %523 = vmatpush2.bf16.msra.mxu0 0
      %524 = vmatprep.subr.bf16.mxu0 0
      %525 = vmatpush2.bf16.msra.mxu0 0
      %526 = vmatprep.subr.bf16.mxu0 0
      %527 = vmatpush2.bf16.msra.mxu0 0
      %528 = vmatprep.subr.bf16.mxu0 0
      %529 = vmatpush2.bf16.msra.mxu0 0
      %530 = vmatprep.subr.bf16.mxu0 0
      %531 = vmatpush2.bf16.msra.mxu0 0
      %532 = vmatprep.subr.bf16.mxu0 0
      %533 = vmatpush2.bf16.msra.mxu0 0
      %534 = vmatprep.subr.bf16.mxu0 0
      %535 = vmatpush2.bf16.msra.mxu0 0
      %536 = vmatprep.subr.bf16.mxu0 0
      %537 = vmatpush2.bf16.msra.mxu0 0
      %538 = vmatprep.mubr.bf16.mxu0 0
      %539 = vmatmul.mubr.bf16.gmra.mxu0 %v501
      %v540 = vpop.f32.mrf.mxu0
      %v541 = vadd.f32 0.0, %v540
      %v542 = vpop.f32.mrf.mxu0
      %v543 = vpop.f32.mrf.mxu0
      %v544 = vpop.f32.mrf.mxu0
      %545 = vdwg.mxu0
      %v546 = vpack.c.bf16 %v541, %v541
      %v548 = vunpack.c.l.b16 %v546
      %v549 = vpack.c.b16 %v548, %v548
      %550 = vrot.lane.b32.xlu0 %v549, 16
      %v551 = vpop.permute.xlu0 %550
      %vm553 = vcmask 191616
      %554 = vst.msk [vmem:[%s168] sm:$0xf] %vm553, %v551
      %v555 = vld [vmem:[%s176] sm:$0xf]
      %v556 = vld [vmem:[%s160] sm:$0xf]
      %v558 = vunpack.c.l.b16 %v555
      %v559 = vpack.c.b16 %v558, %v558
      %560 = vrot.lane.b32.xlu0 %v559, 104
      %v561 = vpop.permute.xlu0 %560
      %v563 = vunpack.c.l.b16 %v556
      %v564 = vpack.c.b16 %v563, %v563
      %565 = vrot.lane.b32.xlu0 %v564, 72
      %v566 = vpop.permute.xlu0 %565
      %v568 = vsel %vm190, %v561, 0
      %v571 = vsel %vm190, %v566, 0
      %573 = vmatprep.subr.bf16.mxu0 0
      %574 = vmatpush1.bf16.xpose.msra.mxu0 0
      %575 = vmatprep.subr.bf16.mxu0 0
      %576 = vmatpush1.bf16.xpose.msra.mxu0 0
      %577 = vmatprep.subr.bf16.mxu0 0
      %578 = vmatpush1.bf16.xpose.msra.mxu0 0
      %579 = vmatprep.subr.bf16.mxu0 0
      %580 = vmatpush1.bf16.xpose.msra.mxu0 0
      %581 = vmatprep.subr.bf16.mxu0 0
      %582 = vmatpush1.bf16.xpose.msra.mxu0 0
      %583 = vmatprep.subr.bf16.mxu0 0
      %584 = vmatpush1.bf16.xpose.msra.mxu0 0
      %585 = vmatprep.subr.bf16.mxu0 0
      %586 = vmatpush1.bf16.xpose.msra.mxu0 0
      %587 = vmatprep.subr.bf16.mxu0 0
      %588 = vmatpush1.bf16.xpose.msra.mxu0 %v571
      %589 = vmatprep.subr.bf16.mxu0 0
      %590 = vmatpush2.bf16.xpose.msra.mxu0 0
      %591 = vmatprep.subr.bf16.mxu0 0
      %592 = vmatpush2.bf16.xpose.msra.mxu0 0
      %593 = vmatprep.subr.bf16.mxu0 0
      %594 = vmatpush2.bf16.xpose.msra.mxu0 0
      %595 = vmatprep.subr.bf16.mxu0 0
      %596 = vmatpush2.bf16.xpose.msra.mxu0 0
      %597 = vmatprep.subr.bf16.mxu0 0
      %598 = vmatpush2.bf16.xpose.msra.mxu0 0
      %599 = vmatprep.subr.bf16.mxu0 0
      %600 = vmatpush2.bf16.xpose.msra.mxu0 0
      %601 = vmatprep.subr.bf16.mxu0 0
      %602 = vmatpush2.bf16.xpose.msra.mxu0 0
      %603 = vmatprep.subr.bf16.mxu0 0
      %604 = vmatpush2.bf16.xpose.msra.mxu0 0
      %605 = vmatprep.mubr.bf16.mxu0 0
      %606 = vmatmul.mubr.bf16.gmra.mxu0 %v568
      %v607 = vpop.f32.mrf.mxu0
      %v608 = vadd.f32 %v183, %v607
      %v609 = vpop.f32.mrf.mxu0
      %v610 = vpop.f32.mrf.mxu0
      %v611 = vpop.f32.mrf.mxu0
      %612 = vdwg.mxu0
      %v613 = vsel %vm190, %v608, -inf
      %614 = vmax.xlane.f32.xlu0 %v613
      %v615 = vpop.xlane.xlu0 %614
      %v616 = vsub.f32 %v608, %v615
      %v617 = vmul.f32 %v616, 1.442695
      %v618 = vpow.pop %v617
      %v619 = vsel %vm190, %v618, 0.0
      %620 = vadd.xlane.f32.xlu0 %v619
      %v621 = vpop.xlane.xlu0 %620
      %v622 = vrcp.pop %v621
      %v623 = vmul.f32 %v618, %v622
      %v624 = vpack.c.bf16 %v623, %v623
      %625 = vrot.lane.b32.xlu0 %v564, 40
      %v626 = vpop.permute.xlu0 %625
      %v628 = vsel %vm190, %v624, 0
      %v631 = vsel %vm254, %v626, 0
      %633 = vmatprep.subr.bf16.mxu0 0
      %634 = vmatpush1.bf16.msra.mxu0 0
      %635 = vmatprep.subr.bf16.mxu0 0
      %636 = vmatpush1.bf16.msra.mxu0 0
      %637 = vmatprep.subr.bf16.mxu0 0
      %638 = vmatpush1.bf16.msra.mxu0 0
      %639 = vmatprep.subr.bf16.mxu0 0
      %640 = vmatpush1.bf16.msra.mxu0 0
      %641 = vmatprep.subr.bf16.mxu0 0
      %642 = vmatpush1.bf16.msra.mxu0 0
      %643 = vmatprep.subr.bf16.mxu0 0
      %644 = vmatpush1.bf16.msra.mxu0 0
      %645 = vmatprep.subr.bf16.mxu0 0
      %646 = vmatpush1.bf16.msra.mxu0 0
      %647 = vmatprep.subr.bf16.mxu0 0
      %648 = vmatpush1.bf16.msra.mxu0 %v631
      %649 = vmatprep.subr.bf16.mxu0 0
      %650 = vmatpush2.bf16.msra.mxu0 0
      %651 = vmatprep.subr.bf16.mxu0 0
      %652 = vmatpush2.bf16.msra.mxu0 0
      %653 = vmatprep.subr.bf16.mxu0 0
      %654 = vmatpush2.bf16.msra.mxu0 0
      %655 = vmatprep.subr.bf16.mxu0 0
      %656 = vmatpush2.bf16.msra.mxu0 0
      %657 = vmatprep.subr.bf16.mxu0 0
      %658 = vmatpush2.bf16.msra.mxu0 0
      %659 = vmatprep.subr.bf16.mxu0 0
      %660 = vmatpush2.bf16.msra.mxu0 0
      %661 = vmatprep.subr.bf16.mxu0 0
      %662 = vmatpush2.bf16.msra.mxu0 0
      %663 = vmatprep.subr.bf16.mxu0 0
      %664 = vmatpush2.bf16.msra.mxu0 0
      %665 = vmatprep.mubr.bf16.mxu0 0
      %666 = vmatmul.mubr.bf16.gmra.mxu0 %v628
      %v667 = vpop.f32.mrf.mxu0
      %v668 = vadd.f32 0.0, %v667
      %v669 = vpop.f32.mrf.mxu0
      %v670 = vpop.f32.mrf.mxu0
      %v671 = vpop.f32.mrf.mxu0
      %672 = vdwg.mxu0
      %v673 = vpack.c.bf16 %v668, %v668
      %v675 = vunpack.c.l.b16 %v673
      %v676 = vpack.c.b16 %v675, %v675
      %677 = vrot.lane.b32.xlu0 %v676, 24
      %v678 = vpop.permute.xlu0 %677
      %vm680 = vcmask 257216
      %681 = vst.msk [vmem:[%s168] sm:$0xf] %vm680, %v678
      %s682 = sadd.s32 %s17, %s18
      %p683 = scmp.lt.s32.totalorder %s682, 1
      %s684 = scalar_select %p683, %s682, 1
      %s685 = smul.addr %s684, 4
      %s686 = scalar_lea.vmem %s2, %s685
      // Predicated region
      $region29: #{transformer_encoder_forward.6} parent=27 // pred_check
        %p687 = pneg %p97
      $region30: #{transformer_encoder_forward.6} parent=27 // pred_check_branch
        %689 = sbr.rel (%p687) target = $region32
      $region31: #{transformer_encoder_forward.6} parent=27 // pred_region
        %s690 = sadd.s32 %s17, %s18
      $region32: #{transformer_encoder_forward.6} parent=27 // pred_fallthru
        _
    $region28: #{transformer_encoder_forward.6} parent=5 // pred_fallthru
      _
    %p691 = scmp.le.s32.totalorder 2, %s8
    // Predicated region
    $region33: #{transformer_encoder_forward.6} parent=5 // pred_check
      %p692 = pneg %p691
    $region34: #{transformer_encoder_forward.6} parent=5 // pred_check_branch
      %694 = sbr.rel (%p692) target = $region36
    $region35: #{transformer_encoder_forward.6} parent=5 // pred_region
      %s695 = ssub.s32 %s8, 2
      // Predicated region
      $region37: #{transformer_encoder_forward.6} parent=35 // pred_check
        %p696 = pneg %p103
      $region38: #{transformer_encoder_forward.6} parent=35 // pred_check_branch
        %698 = sbr.rel (%p696) target = $region40
      $region39: #{transformer_encoder_forward.6} parent=35 // pred_region
        %s699 = sadd.s32 %s19, %s20
        %p700 = scmp.lt.s32.totalorder %s699, 1
        %s701 = scalar_select %p700, %s699, 1
        %s702 = smul.addr %s701, 4
        %s703 = scalar_lea.vmem %s2, %s702
      $region40: #{transformer_encoder_forward.6} parent=35 // pred_fallthru
        _
    $region36: #{transformer_encoder_forward.6} parent=5 // pred_fallthru
      _
  $region6: #{transformer_encoder_forward.6} parent=0 // loop_footer
    %s12 = sadd.s32 1, %s8
  $region7: #{transformer_encoder_forward.6} parent=0 // loop_footer_branch
    %7 = sbr.rel target = $region3
  $region8: #{transformer_encoder_forward.6} parent=0 // loop_exit
    _

</llo_original>
